<compile_context>
chip_gen: v7x
topology: tpu7x:2x2x1
jax: 0.10.0
libtpu: 0.0.40
codegen_flags: <defaults>
</compile_context>

<pallas_src>
import jax
import jax.numpy as jnp
from jax.experimental import pallas as pl
from jax.experimental.pallas import tpu as pltpu


def decoder_kernel(z_ref, w1_ref, b1_ref, w2_ref, b2_ref, w3_ref, b3_ref, o_ref):
    """Fused 3x (Linear + ReLU) MLP decoder on one batch tile.

    Matmuls run on the MXU with bf16 inputs and f32 accumulation; bias add and
    ReLU are kept in f32 on the VPU. Activations are narrowed back to bf16
    only to feed the next matmul.
    """
    # Layer 1: [tb, d0] @ [d0, d1] -> f32 acc, +bias, ReLU.
    h = jnp.dot(z_ref[...], w1_ref[...], preferred_element_type=jnp.float32)
    h = jnp.maximum(h + b1_ref[...], 0.0).astype(jnp.bfloat16)

    # Layer 2: [tb, d1] @ [d1, d2] -> f32 acc, +bias, ReLU.
    h = jnp.dot(h, w2_ref[...], preferred_element_type=jnp.float32)
    h = jnp.maximum(h + b2_ref[...], 0.0).astype(jnp.bfloat16)

    # Layer 3: [tb, d2] @ [d2, d_out] -> f32 acc, +bias, ReLU.
    h = jnp.dot(h, w3_ref[...], preferred_element_type=jnp.float32)
    h = jnp.maximum(h + b3_ref[...], 0.0)

    o_ref[...] = h.astype(o_ref.dtype)


def _round_up(x, m):
    return ((x + m - 1) // m) * m


def _pad_to(a, shape):
    pads = [(0, t - s) for s, t in zip(a.shape, shape)]
    if all(p == (0, 0) for p in pads):
        return a
    return jnp.pad(a, pads)


def decoder_forward(z, params, *, tb=None):
    """z: [B, d0] float32. params: dict of f32 weights [in,out], biases [1,out]."""
    w1, b1 = params["w1"], params["b1"]
    w2, b2 = params["w2"], params["b2"]
    w3, b3 = params["w3"], params["b3"]

    B, d0 = z.shape
    d1, d2, d_out = w1.shape[1], w2.shape[1], w3.shape[1]

    # Lane-pad hidden/output feature dims to multiples of 128 (exact through
    # the ReLUs since padded weights/biases are zero); sublane-pad the latent
    # (contraction) dim to 8.
    d0p = _round_up(d0, 8)
    d1p = _round_up(d1, 128)
    d2p = _round_up(d2, 128)
    d_outp = _round_up(d_out, 128)

    # Batch tile: whole batch in a single grid step when small; otherwise
    # 256-row tiles (fills the 256-wide MXU on v6e/v7x; pass tb=128 explicitly
    # on v5e if vreg pressure ever matters at large layer sizes).
    if tb is None:
        b8 = _round_up(B, 8)
        tb = b8 if b8 <= 512 else 256
    Bp = _round_up(B, tb)

    # Wrapper-side padding + bf16 casts (weights arrive at the kernel already
    # bf16, so there is no in-kernel cast of full weight tiles).
    zp = _pad_to(z, (Bp, d0p)).astype(jnp.bfloat16)
    w1p = _pad_to(w1, (d0p, d1p)).astype(jnp.bfloat16)
    w2p = _pad_to(w2, (d1p, d2p)).astype(jnp.bfloat16)
    w3p = _pad_to(w3, (d2p, d_outp)).astype(jnp.bfloat16)
    b1p = _pad_to(b1, (1, d1p)).astype(jnp.float32)
    b2p = _pad_to(b2, (1, d2p)).astype(jnp.float32)
    b3p = _pad_to(b3, (1, d_outp)).astype(jnp.float32)

    grid = (Bp // tb,)

    flops = 2 * Bp * (d0p * d1p + d1p * d2p + d2p * d_outp)
    bytes_accessed = (
        zp.size * 2 + w1p.size * 2 + w2p.size * 2 + w3p.size * 2
        + (b1p.size + b2p.size + b3p.size) * 4
        + Bp * d_outp * 4
    )
    cost = pl.CostEstimate(flops=flops, transcendentals=0,
                           bytes_accessed=bytes_accessed)

    def build_call(single_buffer_weights):
        def const_spec(shape):
            # Constant index_map -> block is resident across the grid; a
            # second pipeline buffer for it is pure VMEM waste.
            if single_buffer_weights:
                return pl.BlockSpec(shape, lambda i: (0, 0),
                                    pipeline_mode=pl.Buffered(1))
            return pl.BlockSpec(shape, lambda i: (0, 0))

        in_specs = [
            pl.BlockSpec((tb, d0p), lambda i: (i, 0)),   # z tile (batch-tiled)
            const_spec((d0p, d1p)),                      # w1 (full, resident)
            const_spec((1, d1p)),                        # b1
            const_spec((d1p, d2p)),                      # w2
            const_spec((1, d2p)),                        # b2
            const_spec((d2p, d_outp)),                   # w3
            const_spec((1, d_outp)),                     # b3
        ]
        out_specs = pl.BlockSpec((tb, d_outp), lambda i: (i, 0))

        return pl.pallas_call(
            decoder_kernel,
            out_shape=jax.ShapeDtypeStruct((Bp, d_outp), jnp.float32),
            grid_spec=pltpu.PrefetchScalarGridSpec(
                num_scalar_prefetch=0,
                grid=grid,
                in_specs=in_specs,
                out_specs=out_specs,
            ),
            compiler_params=pltpu.CompilerParams(
                dimension_semantics=("parallel",),
                # Explicit limit so v7x (64 MiB physical / 32 MiB scoped) is
                # safe even at the original 100/500/1000/input_dim layer dims.
                vmem_limit_bytes=32 * 1024 * 1024,
            ),
            cost_estimate=cost,
        )

    args = (zp, w1p, b1p, w2p, b2p, w3p, b3p)
    if hasattr(pl, "Buffered"):
        try:
            out = build_call(True)(*args)
        except Exception:
            # pipeline_mode / Buffered(1) unsupported on this JAX version;
            # default double-buffering is harmless at these sizes.
            out = build_call(False)(*args)
    else:
        out = build_call(False)(*args)

    return out[:B, :d_out]


def init_decoder_params(key, input_dim, inter_dims):
    """Mirrors Decoder(input_dim, inter_dims): Linear(inter[-1], inter[-2]),
    Linear(inter[-2], inter[-3]), Linear(inter[-3], input_dim).
    Weights stored as [in, out] (transposed vs. PyTorch), f32."""
    d0, d1, d2, d_out = inter_dims[-1], inter_dims[-2], inter_dims[-3], input_dim
    ks = jax.random.split(key, 6)

    def linear(kw, kb, fan_in, fan_out):
        # PyTorch default: U(-1/sqrt(fan_in), 1/sqrt(fan_in))
        bound = 1.0 / jnp.sqrt(jnp.float32(fan_in))
        w = jax.random.uniform(kw, (fan_in, fan_out), jnp.float32, -bound, bound)
        b = jax.random.uniform(kb, (1, fan_out), jnp.float32, -bound, bound)
        return w, b

    w1, b1 = linear(ks[0], ks[1], d0, d1)
    w2, b2 = linear(ks[2], ks[3], d1, d2)
    w3, b3 = linear(ks[4], ks[5], d2, d_out)
    return {"w1": w1, "b1": b1, "w2": w2, "b2": b2, "w3": w3, "b3": b3}


def decoder_ref(z, params):
    """Pure-JAX f32 reference (same math as the PyTorch forward)."""
    h = jnp.maximum(z @ params["w1"] + params["b1"], 0.0)
    h = jnp.maximum(h @ params["w2"] + params["b2"], 0.0)
    h = jnp.maximum(h @ params["w3"] + params["b3"], 0.0)
    return h


if __name__ == "__main__":
    # Decoder(input_dim=256, inter_dims=[128, 64, 32]) -> z: [B, 32]
    # batch=256 -> one full MXU-width tile, single grid step.
    input_dim = 256
    inter_dims = [128, 64, 32]
    batch = 256

    key = jax.random.PRNGKey(0)
    k_params, k_z = jax.random.split(key)
    params = init_decoder_params(k_params, input_dim, inter_dims)
    z = jax.random.normal(k_z, (batch, inter_dims[-1]), dtype=jnp.float32)

    out = decoder_forward(z, params)
    out = jax.block_until_ready(out)

    ref = decoder_ref(z, params)
    assert out.shape == (batch, input_dim)
    # bf16 matmul inputs with f32 accumulation -> compare loosely vs f32 ref.
    assert jnp.allclose(out, ref, atol=5e-2, rtol=5e-2), "mismatch vs reference"

    print("KERNEL_OK")
</pallas_src>

<mosaic_0001>
module attributes {stable_mosaic.version = 11 : i64} {
  func.func @decoder_kernel(%arg0: i32, %arg1: memref<256x32xbf16, #tpu.memory_space<vmem>>, %arg2: memref<32x128xbf16, #tpu.memory_space<vmem>>, %arg3: memref<1x128xf32, #tpu.memory_space<vmem>>, %arg4: memref<128x128xbf16, #tpu.memory_space<vmem>>, %arg5: memref<1x128xf32, #tpu.memory_space<vmem>>, %arg6: memref<128x256xbf16, #tpu.memory_space<vmem>>, %arg7: memref<1x256xf32, #tpu.memory_space<vmem>>, %arg8: memref<256x256xf32, #tpu.memory_space<vmem>>) attributes {dimension_semantics = [#tpu.dimension_semantics<parallel>], iteration_bounds = array<i64: 1>, scalar_prefetch = 0 : i64, scratch_operands = 0 : i64, tpu.core_type = #tpu.core_type<tc>, window_params = [{transform_indices = @transform_0, window_bounds = array<i64: 256, 32>}, {pipeline_mode = #tpu.pipeline_mode<synchronous>, transform_indices = @transform_1, window_bounds = array<i64: 32, 128>}, {pipeline_mode = #tpu.pipeline_mode<synchronous>, transform_indices = @transform_2, window_bounds = array<i64: 1, 128>}, {pipeline_mode = #tpu.pipeline_mode<synchronous>, transform_indices = @transform_3, window_bounds = array<i64: 128, 128>}, {pipeline_mode = #tpu.pipeline_mode<synchronous>, transform_indices = @transform_4, window_bounds = array<i64: 1, 128>}, {pipeline_mode = #tpu.pipeline_mode<synchronous>, transform_indices = @transform_5, window_bounds = array<i64: 128, 256>}, {pipeline_mode = #tpu.pipeline_mode<synchronous>, transform_indices = @transform_6, window_bounds = array<i64: 1, 256>}, {transform_indices = @transform_7, window_bounds = array<i64: 256, 256>}]} {
    %c0 = arith.constant 0 : index
    %c0_0 = arith.constant 0 : index
    %0 = vector.load %arg1[%c0, %c0_0] : memref<256x32xbf16, #tpu.memory_space<vmem>>, vector<256x32xbf16>
    %c0_1 = arith.constant 0 : index
    %c0_2 = arith.constant 0 : index
    %1 = vector.load %arg2[%c0_1, %c0_2] : memref<32x128xbf16, #tpu.memory_space<vmem>>, vector<32x128xbf16>
    %cst = arith.constant dense<0.000000e+00> : vector<256x128xf32>
    %2 = tpu.matmul %0, %1, %cst {dimension_numbers = #tpu.dot_dimension_numbers<[1], [0], [0], [1], [0, 0, 1, 1], [], []>} : vector<256x32xbf16>, vector<32x128xbf16>, vector<256x128xf32> -> vector<256x128xf32>
    %c0_3 = arith.constant 0 : index
    %c0_4 = arith.constant 0 : index
    %3 = vector.load %arg3[%c0_3, %c0_4] : memref<1x128xf32, #tpu.memory_space<vmem>>, vector<1x128xf32>
    %4 = vector.broadcast %3 : vector<1x128xf32> to vector<256x128xf32>
    %5 = arith.addf %2, %4 : vector<256x128xf32>
    %cst_5 = arith.constant 0.000000e+00 : f32
    %6 = vector.broadcast %cst_5 : f32 to vector<256x128xf32>
    %7 = arith.maximumf %5, %6 : vector<256x128xf32>
    %8 = arith.truncf %7 : vector<256x128xf32> to vector<256x128xbf16>
    %c0_6 = arith.constant 0 : index
    %c0_7 = arith.constant 0 : index
    %9 = vector.load %arg4[%c0_6, %c0_7] : memref<128x128xbf16, #tpu.memory_space<vmem>>, vector<128x128xbf16>
    %cst_8 = arith.constant dense<0.000000e+00> : vector<256x128xf32>
    %10 = tpu.matmul %8, %9, %cst_8 {dimension_numbers = #tpu.dot_dimension_numbers<[1], [0], [0], [1], [0, 0, 1, 1], [], []>} : vector<256x128xbf16>, vector<128x128xbf16>, vector<256x128xf32> -> vector<256x128xf32>
    %c0_9 = arith.constant 0 : index
    %c0_10 = arith.constant 0 : index
    %11 = vector.load %arg5[%c0_9, %c0_10] : memref<1x128xf32, #tpu.memory_space<vmem>>, vector<1x128xf32>
    %12 = vector.broadcast %11 : vector<1x128xf32> to vector<256x128xf32>
    %13 = arith.addf %10, %12 : vector<256x128xf32>
    %cst_11 = arith.constant 0.000000e+00 : f32
    %14 = vector.broadcast %cst_11 : f32 to vector<256x128xf32>
    %15 = arith.maximumf %13, %14 : vector<256x128xf32>
    %16 = arith.truncf %15 : vector<256x128xf32> to vector<256x128xbf16>
    %c0_12 = arith.constant 0 : index
    %c0_13 = arith.constant 0 : index
    %17 = vector.load %arg6[%c0_12, %c0_13] : memref<128x256xbf16, #tpu.memory_space<vmem>>, vector<128x256xbf16>
    %cst_14 = arith.constant dense<0.000000e+00> : vector<256x256xf32>
    %18 = tpu.matmul %16, %17, %cst_14 {dimension_numbers = #tpu.dot_dimension_numbers<[1], [0], [0], [1], [0, 0, 1, 1], [], []>} : vector<256x128xbf16>, vector<128x256xbf16>, vector<256x256xf32> -> vector<256x256xf32>
    %c0_15 = arith.constant 0 : index
    %c0_16 = arith.constant 0 : index
    %19 = vector.load %arg7[%c0_15, %c0_16] : memref<1x256xf32, #tpu.memory_space<vmem>>, vector<1x256xf32>
    %20 = vector.broadcast %19 : vector<1x256xf32> to vector<256x256xf32>
    %21 = arith.addf %18, %20 : vector<256x256xf32>
    %cst_17 = arith.constant 0.000000e+00 : f32
    %22 = vector.broadcast %cst_17 : f32 to vector<256x256xf32>
    %23 = arith.maximumf %21, %22 : vector<256x256xf32>
    %c0_18 = arith.constant 0 : index
    %c0_19 = arith.constant 0 : index
    %24 = vector.load %arg8[%c0_18, %c0_19] : memref<256x256xf32, #tpu.memory_space<vmem>>, vector<256x256xf32>
    tpu.vector_store %arg8[%c0_18, %c0_19], %23 {strides = array<i32>} : memref<256x256xf32, #tpu.memory_space<vmem>>, vector<256x256xf32>,
    return
  }
  func.func @transform_0(%arg0: i32) -> (i32, i32) {
    %c0_i32 = arith.constant 0 : i32
    %c0_i32_0 = arith.constant 0 : i32
    return %arg0, %c0_i32 : i32, i32
  }
  func.func @transform_1(%arg0: i32) -> (i32, i32) {
    %c0_i32 = arith.constant 0 : i32
    %c0_i32_0 = arith.constant 0 : i32
    %c0_i32_1 = arith.constant 0 : i32
    return %c0_i32, %c0_i32_0 : i32, i32
  }
  func.func @transform_2(%arg0: i32) -> (i32, i32) {
    %c0_i32 = arith.constant 0 : i32
    %c0_i32_0 = arith.constant 0 : i32
    %c0_i32_1 = arith.constant 0 : i32
    return %c0_i32, %c0_i32_0 : i32, i32
  }
  func.func @transform_3(%arg0: i32) -> (i32, i32) {
    %c0_i32 = arith.constant 0 : i32
    %c0_i32_0 = arith.constant 0 : i32
    %c0_i32_1 = arith.constant 0 : i32
    return %c0_i32, %c0_i32_0 : i32, i32
  }
  func.func @transform_4(%arg0: i32) -> (i32, i32) {
    %c0_i32 = arith.constant 0 : i32
    %c0_i32_0 = arith.constant 0 : i32
    %c0_i32_1 = arith.constant 0 : i32
    return %c0_i32, %c0_i32_0 : i32, i32
  }
  func.func @transform_5(%arg0: i32) -> (i32, i32) {
    %c0_i32 = arith.constant 0 : i32
    %c0_i32_0 = arith.constant 0 : i32
    %c0_i32_1 = arith.constant 0 : i32
    return %c0_i32, %c0_i32_0 : i32, i32
  }
  func.func @transform_6(%arg0: i32) -> (i32, i32) {
    %c0_i32 = arith.constant 0 : i32
    %c0_i32_0 = arith.constant 0 : i32
    %c0_i32_1 = arith.constant 0 : i32
    return %c0_i32, %c0_i32_0 : i32, i32
  }
  func.func @transform_7(%arg0: i32) -> (i32, i32) {
    %c0_i32 = arith.constant 0 : i32
    %c0_i32_0 = arith.constant 0 : i32
    return %arg0, %c0_i32 : i32, i32
  }
}

module attributes {stable_mosaic.version = 11 : i64} {
  func.func @decoder_kernel(%arg0: i32, %arg1: memref<256x32xbf16, #tpu.memory_space<vmem>>, %arg2: memref<32x128xbf16, #tpu.memory_space<vmem>>, %arg3: memref<1x128xf32, #tpu.memory_space<vmem>>, %arg4: memref<128x128xbf16, #tpu.memory_space<vmem>>, %arg5: memref<1x128xf32, #tpu.memory_space<vmem>>, %arg6: memref<128x256xbf16, #tpu.memory_space<vmem>>, %arg7: memref<1x256xf32, #tpu.memory_space<vmem>>, %arg8: memref<256x256xf32, #tpu.memory_space<vmem>>) attributes {dimension_semantics = [#tpu.dimension_semantics<parallel>], iteration_bounds = array<i64: 1>, scalar_prefetch = 0 : i64, scratch_operands = 0 : i64, tpu.core_type = #tpu.core_type<tc>, window_params = [{transform_indices = @transform_0, window_bounds = array<i64: 256, 32>}, {pipeline_mode = #tpu.pipeline_mode<synchronous>, transform_indices = @transform_1, window_bounds = array<i64: 32, 128>}, {pipeline_mode = #tpu.pipeline_mode<synchronous>, transform_indices = @transform_2, window_bounds = array<i64: 1, 128>}, {pipeline_mode = #tpu.pipeline_mode<synchronous>, transform_indices = @transform_3, window_bounds = array<i64: 128, 128>}, {pipeline_mode = #tpu.pipeline_mode<synchronous>, transform_indices = @transform_4, window_bounds = array<i64: 1, 128>}, {pipeline_mode = #tpu.pipeline_mode<synchronous>, transform_indices = @transform_5, window_bounds = array<i64: 128, 256>}, {pipeline_mode = #tpu.pipeline_mode<synchronous>, transform_indices = @transform_6, window_bounds = array<i64: 1, 256>}, {transform_indices = @transform_7, window_bounds = array<i64: 256, 256>}]} {
    %c0 = arith.constant 0 : index
    %c0_0 = arith.constant 0 : index
    %0 = vector.load %arg1[%c0, %c0_0] : memref<256x32xbf16, #tpu.memory_space<vmem>>, vector<256x32xbf16>
    %c0_1 = arith.constant 0 : index
    %c0_2 = arith.constant 0 : index
    %1 = vector.load %arg2[%c0_1, %c0_2] : memref<32x128xbf16, #tpu.memory_space<vmem>>, vector<32x128xbf16>
    %cst = arith.constant dense<0.000000e+00> : vector<256x128xf32>
    %2 = tpu.matmul %0, %1, %cst {dimension_numbers = #tpu.dot_dimension_numbers<[1], [0], [0], [1], [0, 0, 1, 1], [], []>} : vector<256x32xbf16>, vector<32x128xbf16>, vector<256x128xf32> -> vector<256x128xf32>
    %c0_3 = arith.constant 0 : index
    %c0_4 = arith.constant 0 : index
    %3 = vector.load %arg3[%c0_3, %c0_4] : memref<1x128xf32, #tpu.memory_space<vmem>>, vector<1x128xf32>
    %4 = vector.broadcast %3 : vector<1x128xf32> to vector<256x128xf32>
    %5 = arith.addf %2, %4 : vector<256x128xf32>
    %cst_5 = arith.constant 0.000000e+00 : f32
    %6 = vector.broadcast %cst_5 : f32 to vector<256x128xf32>
    %7 = arith.maximumf %5, %6 : vector<256x128xf32>
    %8 = arith.truncf %7 : vector<256x128xf32> to vector<256x128xbf16>
    %c0_6 = arith.constant 0 : index
    %c0_7 = arith.constant 0 : index
    %9 = vector.load %arg4[%c0_6, %c0_7] : memref<128x128xbf16, #tpu.memory_space<vmem>>, vector<128x128xbf16>
    %cst_8 = arith.constant dense<0.000000e+00> : vector<256x128xf32>
    %10 = tpu.matmul %8, %9, %cst_8 {dimension_numbers = #tpu.dot_dimension_numbers<[1], [0], [0], [1], [0, 0, 1, 1], [], []>} : vector<256x128xbf16>, vector<128x128xbf16>, vector<256x128xf32> -> vector<256x128xf32>
    %c0_9 = arith.constant 0 : index
    %c0_10 = arith.constant 0 : index
    %11 = vector.load %arg5[%c0_9, %c0_10] : memref<1x128xf32, #tpu.memory_space<vmem>>, vector<1x128xf32>
    %12 = vector.broadcast %11 : vector<1x128xf32> to vector<256x128xf32>
    %13 = arith.addf %10, %12 : vector<256x128xf32>
    %cst_11 = arith.constant 0.000000e+00 : f32
    %14 = vector.broadcast %cst_11 : f32 to vector<256x128xf32>
    %15 = arith.maximumf %13, %14 : vector<256x128xf32>
    %16 = arith.truncf %15 : vector<256x128xf32> to vector<256x128xbf16>
    %c0_12 = arith.constant 0 : index
    %c0_13 = arith.constant 0 : index
    %17 = vector.load %arg6[%c0_12, %c0_13] : memref<128x256xbf16, #tpu.memory_space<vmem>>, vector<128x256xbf16>
    %cst_14 = arith.constant dense<0.000000e+00> : vector<256x256xf32>
    %18 = tpu.matmul %16, %17, %cst_14 {dimension_numbers = #tpu.dot_dimension_numbers<[1], [0], [0], [1], [0, 0, 1, 1], [], []>} : vector<256x128xbf16>, vector<128x256xbf16>, vector<256x256xf32> -> vector<256x256xf32>
    %c0_15 = arith.constant 0 : index
    %c0_16 = arith.constant 0 : index
    %19 = vector.load %arg7[%c0_15, %c0_16] : memref<1x256xf32, #tpu.memory_space<vmem>>, vector<1x256xf32>
    %20 = vector.broadcast %19 : vector<1x256xf32> to vector<256x256xf32>
    %21 = arith.addf %18, %20 : vector<256x256xf32>
    %cst_17 = arith.constant 0.000000e+00 : f32
    %22 = vector.broadcast %cst_17 : f32 to vector<256x256xf32>
    %23 = arith.maximumf %21, %22 : vector<256x256xf32>
    %c0_18 = arith.constant 0 : index
    %c0_19 = arith.constant 0 : index
    %24 = vector.load %arg8[%c0_18, %c0_19] : memref<256x256xf32, #tpu.memory_space<vmem>>, vector<256x256xf32>
    tpu.vector_store %arg8[%c0_18, %c0_19], %23 {strides = array<i32>} : memref<256x256xf32, #tpu.memory_space<vmem>>, vector<256x256xf32>,
    return
  }
  func.func @transform_0(%arg0: i32) -> (i32, i32) {
    %c0_i32 = arith.constant 0 : i32
    %c0_i32_0 = arith.constant 0 : i32
    return %arg0, %c0_i32 : i32, i32
  }
  func.func @transform_1(%arg0: i32) -> (i32, i32) {
    %c0_i32 = arith.constant 0 : i32
    %c0_i32_0 = arith.constant 0 : i32
    %c0_i32_1 = arith.constant 0 : i32
    return %c0_i32, %c0_i32_0 : i32, i32
  }
  func.func @transform_2(%arg0: i32) -> (i32, i32) {
    %c0_i32 = arith.constant 0 : i32
    %c0_i32_0 = arith.constant 0 : i32
    %c0_i32_1 = arith.constant 0 : i32
    return %c0_i32, %c0_i32_0 : i32, i32
  }
  func.func @transform_3(%arg0: i32) -> (i32, i32) {
    %c0_i32 = arith.constant 0 : i32
    %c0_i32_0 = arith.constant 0 : i32
    %c0_i32_1 = arith.constant 0 : i32
    return %c0_i32, %c0_i32_0 : i32, i32
  }
  func.func @transform_4(%arg0: i32) -> (i32, i32) {
    %c0_i32 = arith.constant 0 : i32
    %c0_i32_0 = arith.constant 0 : i32
    %c0_i32_1 = arith.constant 0 : i32
    return %c0_i32, %c0_i32_0 : i32, i32
  }
  func.func @transform_5(%arg0: i32) -> (i32, i32) {
    %c0_i32 = arith.constant 0 : i32
    %c0_i32_0 = arith.constant 0 : i32
    %c0_i32_1 = arith.constant 0 : i32
    return %c0_i32, %c0_i32_0 : i32, i32
  }
  func.func @transform_6(%arg0: i32) -> (i32, i32) {
    %c0_i32 = arith.constant 0 : i32
    %c0_i32_0 = arith.constant 0 : i32
    %c0_i32_1 = arith.constant 0 : i32
    return %c0_i32, %c0_i32_0 : i32, i32
  }
  func.func @transform_7(%arg0: i32) -> (i32, i32) {
    %c0_i32 = arith.constant 0 : i32
    %c0_i32_0 = arith.constant 0 : i32
    return %arg0, %c0_i32 : i32, i32
  }
}

</mosaic_0001>

<llo_original>
// kernel: tpu_custom_call.1
$region0: #{tpu_custom_call.1}
  #allocation0 [shape = 'u32[]', space=smem, size = 0x4, offset = 0x4, fixed_abs, tag = 'smem constant byte address 0x4 - core index']
  #allocation1 [shape = 'u32[144,128]{1,0:T(1,128)}', space=vmem, size = 0x12000, scoped, tag = 'internal scratch']
  %s0 = inlined_call_operand.vmem [shape: bf16[256,32], index: 0, kind: input, shape index: {}]
  %s1 = inlined_call_operand.vmem [shape: bf16[32,128], index: 1, kind: input, shape index: {}]
  %s2 = inlined_call_operand.vmem [shape: f32[1,128], index: 2, kind: input, shape index: {}]
  %s3 = inlined_call_operand.hbm [shape: bf16[128,128], index: 3, kind: input, shape index: {}]
  %s4 = inlined_call_operand.vmem [shape: f32[1,128], index: 4, kind: input, shape index: {}]
  %s5 = inlined_call_operand.vmem [shape: bf16[128,256], index: 5, kind: input, shape index: {}]
  %s6 = inlined_call_operand.vmem [shape: f32[1,256], index: 6, kind: input, shape index: {}]
  %s7 = inlined_call_operand.hbm [shape: f32[256,256], index: 7, kind: output, shape index: {}]
  %s8 = sld [smem:[#allocation0]]
  $region42: #{tpu_custom_call.1} parent=0
    _
  %s10 = ssub.s32 1, %s8
  %s11 = scalar_select 0, %s10, %s8
  $region1: #{tpu_custom_call.1} parent=0
    #allocation2 [shape = 'u8[32768]{0}', space=vmem, size = 0x8000, scoped, tag = 'input window, operand 3, single buffered']
    #allocation3 [shape = 's32[1]{0}', space=sflag, size = 0x4, scoped, tag = 'scoped memory for tpu_custom_call.1']
    #allocation4 [shape = 's32[1]{0}', space=sflag, size = 0x4, scoped, tag = 'scoped memory for tpu_custom_call.1']
    #allocation5 [shape = 'u8[262144]{0}', space=vmem, size = 0x40000, scoped, tag = 'output window, operand 0, single buffered']
    %12 = vsyncpa [#allocation3], 0
    %13 = vsyncpa [#allocation4], 0
    // Predicated region
    $region2: #{tpu_custom_call.1} parent=1 // pred_check
      _
    $region3: #{tpu_custom_call.1} parent=1 // pred_check_branch
      %15 = sbr.rel (0) target = $region5
    $region4: #{tpu_custom_call.1} parent=1 // pred_region
      _
    $region5: #{tpu_custom_call.1} parent=1 // pred_fallthru
      _
    // Predicated region
    $region6: #{tpu_custom_call.1} parent=1 // pred_check
      _
    $region7: #{tpu_custom_call.1} parent=1 // pred_check_branch
      %17 = sbr.rel (0) target = $region9
    $region8: #{tpu_custom_call.1} parent=1 // pred_region
      _
    $region9: #{tpu_custom_call.1} parent=1 // pred_fallthru
      _
    // Predicated region
    $region10: #{tpu_custom_call.1} parent=1 // pred_check
      _
    $region11: #{tpu_custom_call.1} parent=1 // pred_check_branch
      %19 = sbr.rel (0) target = $region13
    $region12: #{tpu_custom_call.1} parent=1 // pred_region
      _
    $region13: #{tpu_custom_call.1} parent=1 // pred_fallthru
      _
    // Predicated region
    $region14: #{tpu_custom_call.1} parent=1 // pred_check
      _
    $region15: #{tpu_custom_call.1} parent=1 // pred_check_branch
      %21 = sbr.rel (0) target = $region17
    $region16: #{tpu_custom_call.1} parent=1 // pred_region
      %s23 = ssub.s32 1024, 1024
      %24 = vsyncadd [#allocation3], %s23
      %s25 = sshll.u32 [#allocation2], 4
      %s26 = int_to_ptr.vmem [resolvable:$true] %s25
      %31 = dma.hbm_to_vmem [thread:$0]  %s3, 1024, %s26, [#allocation3], 64, 64, 4
    $region17: #{tpu_custom_call.1} parent=1 // pred_fallthru
      _
    // Predicated region
    $region18: #{tpu_custom_call.1} parent=1 // pred_check
      _
    $region19: #{tpu_custom_call.1} parent=1 // pred_check_branch
      %33 = sbr.rel (0) target = $region21
    $region20: #{tpu_custom_call.1} parent=1 // pred_region
      _
    $region21: #{tpu_custom_call.1} parent=1 // pred_fallthru
      _
    // Predicated region
    $region22: #{tpu_custom_call.1} parent=1 // pred_check
      _
    $region23: #{tpu_custom_call.1} parent=1 // pred_check_branch
      %35 = sbr.rel (0) target = $region25
    $region24: #{tpu_custom_call.1} parent=1 // pred_region
      _
    $region25: #{tpu_custom_call.1} parent=1 // pred_fallthru
      _
    // Predicated region
    $region26: #{tpu_custom_call.1} parent=1 // pred_check
      _
    $region27: #{tpu_custom_call.1} parent=1 // pred_check_branch
      %37 = sbr.rel (0) target = $region29
    $region28: #{tpu_custom_call.1} parent=1 // pred_region
      _
    $region29: #{tpu_custom_call.1} parent=1 // pred_fallthru
      _
    // Predicated region
    $region30: #{tpu_custom_call.1} parent=1 // pred_check
      _
    $region31: #{tpu_custom_call.1} parent=1 // pred_check_branch
      %39 = sbr.rel (0) target = $region33
    $region32: #{tpu_custom_call.1} parent=1 // pred_region
      %40 = dma.done [#allocation3], 1024
    $region33: #{tpu_custom_call.1} parent=1 // pred_fallthru
      _
    %v42 = vld [vmem:[%s0] sm:$0xf]
    %v43 = vld [vmem:[%s0 + $0x4] sm:$0xf]
    %v44 = vld [vmem:[%s0 + $0x8] sm:$0xf]
    %v45 = vld [vmem:[%s0 + $0xc] sm:$0xf]
    %v46 = vld [vmem:[%s0 + $0x10] sm:$0xf]
    %v47 = vld [vmem:[%s0 + $0x14] sm:$0xf]
    %v48 = vld [vmem:[%s0 + $0x18] sm:$0xf]
    %v49 = vld [vmem:[%s0 + $0x1c] sm:$0xf]
    %v50 = vld [vmem:[%s0 + $0x20] sm:$0xf]
    %v51 = vld [vmem:[%s0 + $0x24] sm:$0xf]
    %v52 = vld [vmem:[%s0 + $0x28] sm:$0xf]
    %v53 = vld [vmem:[%s0 + $0x2c] sm:$0xf]
    %v54 = vld [vmem:[%s0 + $0x30] sm:$0xf]
    %v55 = vld [vmem:[%s0 + $0x34] sm:$0xf]
    %v56 = vld [vmem:[%s0 + $0x38] sm:$0xf]
    %v57 = vld [vmem:[%s0 + $0x3c] sm:$0xf]
    %v58 = vld [vmem:[%s0 + $0x40] sm:$0xf]
    %v59 = vld [vmem:[%s0 + $0x44] sm:$0xf]
    %v60 = vld [vmem:[%s0 + $0x48] sm:$0xf]
    %v61 = vld [vmem:[%s0 + $0x4c] sm:$0xf]
    %v62 = vld [vmem:[%s0 + $0x50] sm:$0xf]
    %v63 = vld [vmem:[%s0 + $0x54] sm:$0xf]
    %v64 = vld [vmem:[%s0 + $0x58] sm:$0xf]
    %v65 = vld [vmem:[%s0 + $0x5c] sm:$0xf]
    %v66 = vld [vmem:[%s0 + $0x60] sm:$0xf]
    %v67 = vld [vmem:[%s0 + $0x64] sm:$0xf]
    %v68 = vld [vmem:[%s0 + $0x68] sm:$0xf]
    %v69 = vld [vmem:[%s0 + $0x6c] sm:$0xf]
    %v70 = vld [vmem:[%s0 + $0x70] sm:$0xf]
    %v71 = vld [vmem:[%s0 + $0x74] sm:$0xf]
    %v72 = vld [vmem:[%s0 + $0x78] sm:$0xf]
    %v73 = vld [vmem:[%s0 + $0x7c] sm:$0xf]
    %v74 = vld [vmem:[%s1] sm:$0xf]
    %v75 = vld [vmem:[%s1 + $0x4] sm:$0xf]
    %v76 = vld [vmem:[%s1 + $0x8] sm:$0xf]
    %v77 = vld [vmem:[%s1 + $0xc] sm:$0xf]
    %v78 = vld [vmem:[%s2] sm:$0x1]
    %v80 = vlaneseq
    %v81 = vshrl.u32 %v80, 7
    %v82 = vsub.s32 0, %v81
    %v83 = vrot.slane %v78, %v82
    %v117 = vunpack.c.l.b16 %v42
    %v118 = vunpack.c.l.b16 %v43
    %v119 = vunpack.c.l.b16 %v44
    %v120 = vunpack.c.l.b16 %v45
    %v121 = vunpack.c.l.b16 %v46
    %v122 = vunpack.c.l.b16 %v47
    %v123 = vunpack.c.l.b16 %v48
    %v124 = vunpack.c.l.b16 %v49
    %v125 = vunpack.c.l.b16 %v50
    %v126 = vunpack.c.l.b16 %v51
    %v127 = vunpack.c.l.b16 %v52
    %v128 = vunpack.c.l.b16 %v53
    %v129 = vunpack.c.l.b16 %v54
    %v130 = vunpack.c.l.b16 %v55
    %v131 = vunpack.c.l.b16 %v56
    %v132 = vunpack.c.l.b16 %v57
    %v133 = vunpack.c.l.b16 %v58
    %v134 = vunpack.c.l.b16 %v59
    %v135 = vunpack.c.l.b16 %v60
    %v136 = vunpack.c.l.b16 %v61
    %v137 = vunpack.c.l.b16 %v62
    %v138 = vunpack.c.l.b16 %v63
    %v139 = vunpack.c.l.b16 %v64
    %v140 = vunpack.c.l.b16 %v65
    %v141 = vunpack.c.l.b16 %v66
    %v142 = vunpack.c.l.b16 %v67
    %v143 = vunpack.c.l.b16 %v68
    %v144 = vunpack.c.l.b16 %v69
    %v145 = vunpack.c.l.b16 %v70
    %v146 = vunpack.c.l.b16 %v71
    %v147 = vunpack.c.l.b16 %v72
    %v148 = vunpack.c.l.b16 %v73
    %v149 = vpack.c.b16 %v118, %v117
    %v150 = vpack.c.b16 %v120, %v119
    %v151 = vpack.c.b16 %v122, %v121
    %v152 = vpack.c.b16 %v124, %v123
    %v153 = vpack.c.b16 %v126, %v125
    %v154 = vpack.c.b16 %v128, %v127
    %v155 = vpack.c.b16 %v130, %v129
    %v156 = vpack.c.b16 %v132, %v131
    %v157 = vpack.c.b16 %v134, %v133
    %v158 = vpack.c.b16 %v136, %v135
    %v159 = vpack.c.b16 %v138, %v137
    %v160 = vpack.c.b16 %v140, %v139
    %v161 = vpack.c.b16 %v142, %v141
    %v162 = vpack.c.b16 %v144, %v143
    %v163 = vpack.c.b16 %v146, %v145
    %v164 = vpack.c.b16 %v148, %v147
    %v169 = vunpack.c.l.b16 %v74
    %v170 = vunpack.c.l.b16 %v75
    %v171 = vunpack.c.l.b16 %v76
    %v172 = vunpack.c.l.b16 %v77
    %v173 = vpack.c.b16 %v170, %v169
    %v174 = vpack.c.b16 %v172, %v171
    %vm177 = vcmask 261120
    %v179 = vsel %vm177, %v149, 0
    %v182 = vsel %vm177, %v150, 0
    %v185 = vsel %vm177, %v151, 0
    %v188 = vsel %vm177, %v152, 0
    %v191 = vsel %vm177, %v153, 0
    %v194 = vsel %vm177, %v154, 0
    %v197 = vsel %vm177, %v155, 0
    %v200 = vsel %vm177, %v156, 0
    %v203 = vsel %vm177, %v157, 0
    %v206 = vsel %vm177, %v158, 0
    %v209 = vsel %vm177, %v159, 0
    %v212 = vsel %vm177, %v160, 0
    %v215 = vsel %vm177, %v161, 0
    %v218 = vsel %vm177, %v162, 0
    %v221 = vsel %vm177, %v163, 0
    %v224 = vsel %vm177, %v164, 0
    %226 = vmatprep.subr.bf16.mxu0 0
    %227 = vmatpush1.bf16.msra.mxu0 %v173
    %228 = vmatprep.subr.bf16.mxu0 0
    %229 = vmatpush1.bf16.msra.mxu0 %v174
    %230 = vmatprep.subr.bf16.mxu0 0
    %231 = vmatpush1.bf16.msra.mxu0 0
    %232 = vmatprep.subr.bf16.mxu0 0
    %233 = vmatpush1.bf16.msra.mxu0 0
    %234 = vmatprep.subr.bf16.mxu0 0
    %235 = vmatpush1.bf16.msra.mxu0 0
    %236 = vmatprep.subr.bf16.mxu0 0
    %237 = vmatpush1.bf16.msra.mxu0 0
    %238 = vmatprep.subr.bf16.mxu0 0
    %239 = vmatpush1.bf16.msra.mxu0 0
    %240 = vmatprep.subr.bf16.mxu0 0
    %241 = vmatpush1.bf16.msra.mxu0 0
    %242 = vmatprep.subr.bf16.mxu0 0
    %243 = vmatpush1.bf16.msra.mxu0 0
    %244 = vmatprep.subr.bf16.mxu0 0
    %245 = vmatpush1.bf16.msra.mxu0 0
    %246 = vmatprep.subr.bf16.mxu0 0
    %247 = vmatpush1.bf16.msra.mxu0 0
    %248 = vmatprep.subr.bf16.mxu0 0
    %249 = vmatpush1.bf16.msra.mxu0 0
    %250 = vmatprep.subr.bf16.mxu0 0
    %251 = vmatpush1.bf16.msra.mxu0 0
    %252 = vmatprep.subr.bf16.mxu0 0
    %253 = vmatpush1.bf16.msra.mxu0 0
    %254 = vmatprep.subr.bf16.mxu0 0
    %255 = vmatpush1.bf16.msra.mxu0 0
    %256 = vmatprep.subr.bf16.mxu0 0
    %257 = vmatpush1.bf16.msra.mxu0 0
    %258 = vmatprep.mubr.bf16.mxu0 0
    %259 = vmatmul.mubr.bf16.gmra.mrb[0].mxu0 %v179
    %v260 = vpop.f32.mrb[0].mxu0
    %v261 = vadd.f32 %v83, %v260
    %v262 = vpop.f32.mrb[0].mxu0
    %v263 = vpop.f32.mrb[0].mxu0
    %v264 = vadd.f32 %v83, %v263
    %v265 = vpop.f32.mrb[0].mxu0
    %266 = vmatprep.mubr.bf16.mxu0 0
    %267 = vmatmul.mubr.bf16.gmra.mrb[0].mxu0 %v182
    %v268 = vpop.f32.mrb[0].mxu0
    %v269 = vadd.f32 %v83, %v268
    %v270 = vpop.f32.mrb[0].mxu0
    %v271 = vpop.f32.mrb[0].mxu0
    %v272 = vadd.f32 %v83, %v271
    %v273 = vpop.f32.mrb[0].mxu0
    %274 = vmatprep.mubr.bf16.mxu0 0
    %275 = vmatmul.mubr.bf16.gmra.mrb[0].mxu0 %v185
    %v276 = vpop.f32.mrb[0].mxu0
    %v277 = vadd.f32 %v83, %v276
    %v278 = vpop.f32.mrb[0].mxu0
    %v279 = vpop.f32.mrb[0].mxu0
    %v280 = vadd.f32 %v83, %v279
    %v281 = vpop.f32.mrb[0].mxu0
    %282 = vmatprep.mubr.bf16.mxu0 0
    %283 = vmatmul.mubr.bf16.gmra.mrb[0].mxu0 %v188
    %v284 = vpop.f32.mrb[0].mxu0
    %v285 = vadd.f32 %v83, %v284
    %v286 = vpop.f32.mrb[0].mxu0
    %v287 = vpop.f32.mrb[0].mxu0
    %v288 = vadd.f32 %v83, %v287
    %v289 = vpop.f32.mrb[0].mxu0
    %290 = vmatprep.mubr.bf16.mxu0 0
    %291 = vmatmul.mubr.bf16.gmra.mrb[0].mxu0 %v191
    %v292 = vpop.f32.mrb[0].mxu0
    %v293 = vadd.f32 %v83, %v292
    %v294 = vpop.f32.mrb[0].mxu0
    %v295 = vpop.f32.mrb[0].mxu0
    %v296 = vadd.f32 %v83, %v295
    %v297 = vpop.f32.mrb[0].mxu0
    %298 = vmatprep.mubr.bf16.mxu0 0
    %299 = vmatmul.mubr.bf16.gmra.mrb[0].mxu0 %v194
    %v300 = vpop.f32.mrb[0].mxu0
    %v301 = vadd.f32 %v83, %v300
    %v302 = vpop.f32.mrb[0].mxu0
    %v303 = vpop.f32.mrb[0].mxu0
    %v304 = vadd.f32 %v83, %v303
    %v305 = vpop.f32.mrb[0].mxu0
    %306 = vmatprep.mubr.bf16.mxu0 0
    %307 = vmatmul.mubr.bf16.gmra.mrb[0].mxu0 %v197
    %v308 = vpop.f32.mrb[0].mxu0
    %v309 = vadd.f32 %v83, %v308
    %v310 = vpop.f32.mrb[0].mxu0
    %v311 = vpop.f32.mrb[0].mxu0
    %v312 = vadd.f32 %v83, %v311
    %v313 = vpop.f32.mrb[0].mxu0
    %314 = vmatprep.mubr.bf16.mxu0 0
    %315 = vmatmul.mubr.bf16.gmra.mrb[0].mxu0 %v200
    %v316 = vpop.f32.mrb[0].mxu0
    %v317 = vadd.f32 %v83, %v316
    %v318 = vpop.f32.mrb[0].mxu0
    %v319 = vpop.f32.mrb[0].mxu0
    %v320 = vadd.f32 %v83, %v319
    %v321 = vpop.f32.mrb[0].mxu0
    %322 = vmatprep.mubr.bf16.mxu0 0
    %323 = vmatmul.mubr.bf16.gmra.mrb[0].mxu0 %v203
    %v324 = vpop.f32.mrb[0].mxu0
    %v325 = vadd.f32 %v83, %v324
    %v326 = vpop.f32.mrb[0].mxu0
    %v327 = vpop.f32.mrb[0].mxu0
    %v328 = vadd.f32 %v83, %v327
    %v329 = vpop.f32.mrb[0].mxu0
    %330 = vmatprep.mubr.bf16.mxu0 0
    %331 = vmatmul.mubr.bf16.gmra.mrb[0].mxu0 %v206
    %v332 = vpop.f32.mrb[0].mxu0
    %v333 = vadd.f32 %v83, %v332
    %v334 = vpop.f32.mrb[0].mxu0
    %v335 = vpop.f32.mrb[0].mxu0
    %v336 = vadd.f32 %v83, %v335
    %v337 = vpop.f32.mrb[0].mxu0
    %338 = vmatprep.mubr.bf16.mxu0 0
    %339 = vmatmul.mubr.bf16.gmra.mrb[0].mxu0 %v209
    %v340 = vpop.f32.mrb[0].mxu0
    %v341 = vadd.f32 %v83, %v340
    %v342 = vpop.f32.mrb[0].mxu0
    %v343 = vpop.f32.mrb[0].mxu0
    %v344 = vadd.f32 %v83, %v343
    %v345 = vpop.f32.mrb[0].mxu0
    %346 = vmatprep.mubr.bf16.mxu0 0
    %347 = vmatmul.mubr.bf16.gmra.mrb[0].mxu0 %v212
    %v348 = vpop.f32.mrb[0].mxu0
    %v349 = vadd.f32 %v83, %v348
    %v350 = vpop.f32.mrb[0].mxu0
    %v351 = vpop.f32.mrb[0].mxu0
    %v352 = vadd.f32 %v83, %v351
    %v353 = vpop.f32.mrb[0].mxu0
    %354 = vmatprep.mubr.bf16.mxu0 0
    %355 = vmatmul.mubr.bf16.gmra.mrb[0].mxu0 %v215
    %v356 = vpop.f32.mrb[0].mxu0
    %v357 = vadd.f32 %v83, %v356
    %v358 = vpop.f32.mrb[0].mxu0
    %v359 = vpop.f32.mrb[0].mxu0
    %v360 = vadd.f32 %v83, %v359
    %v361 = vpop.f32.mrb[0].mxu0
    %362 = vmatprep.mubr.bf16.mxu0 0
    %363 = vmatmul.mubr.bf16.gmra.mrb[0].mxu0 %v218
    %v364 = vpop.f32.mrb[0].mxu0
    %v365 = vadd.f32 %v83, %v364
    %v366 = vpop.f32.mrb[0].mxu0
    %v367 = vpop.f32.mrb[0].mxu0
    %v368 = vadd.f32 %v83, %v367
    %v369 = vpop.f32.mrb[0].mxu0
    %370 = vmatprep.mubr.bf16.mxu0 0
    %371 = vmatmul.mubr.bf16.gmra.mrb[0].mxu0 %v221
    %v372 = vpop.f32.mrb[0].mxu0
    %v373 = vadd.f32 %v83, %v372
    %v374 = vpop.f32.mrb[0].mxu0
    %v375 = vpop.f32.mrb[0].mxu0
    %v376 = vadd.f32 %v83, %v375
    %v377 = vpop.f32.mrb[0].mxu0
    %378 = vmatprep.mubr.bf16.mxu0 0
    %379 = vmatmul.mubr.bf16.gmra.mrb[0].mxu0 %v224
    %v380 = vpop.f32.mrb[0].mxu0
    %v381 = vadd.f32 %v83, %v380
    %v382 = vpop.f32.mrb[0].mxu0
    %v383 = vpop.f32.mrb[0].mxu0
    %v384 = vadd.f32 %v83, %v383
    %v385 = vpop.f32.mrb[0].mxu0
    %386 = vdwg.mxu0
    %v387 = vmax.f32 %v261, 0.0
    %v388 = vmax.f32 %v264, 0.0
    %v389 = vmax.f32 %v269, 0.0
    %v390 = vmax.f32 %v272, 0.0
    %v391 = vmax.f32 %v277, 0.0
    %v392 = vmax.f32 %v280, 0.0
    %v393 = vmax.f32 %v285, 0.0
    %v394 = vmax.f32 %v288, 0.0
    %v395 = vmax.f32 %v293, 0.0
    %v396 = vmax.f32 %v296, 0.0
    %v397 = vmax.f32 %v301, 0.0
    %v398 = vmax.f32 %v304, 0.0
    %v399 = vmax.f32 %v309, 0.0
    %v400 = vmax.f32 %v312, 0.0
    %v401 = vmax.f32 %v317, 0.0
    %v402 = vmax.f32 %v320, 0.0
    %v403 = vmax.f32 %v325, 0.0
    %v404 = vmax.f32 %v328, 0.0
    %v405 = vmax.f32 %v333, 0.0
    %v406 = vmax.f32 %v336, 0.0
    %v407 = vmax.f32 %v341, 0.0
    %v408 = vmax.f32 %v344, 0.0
    %v409 = vmax.f32 %v349, 0.0
    %v410 = vmax.f32 %v352, 0.0
    %v411 = vmax.f32 %v357, 0.0
    %v412 = vmax.f32 %v360, 0.0
    %v413 = vmax.f32 %v365, 0.0
    %v414 = vmax.f32 %v368, 0.0
    %v415 = vmax.f32 %v373, 0.0
    %v416 = vmax.f32 %v376, 0.0
    %v417 = vmax.f32 %v381, 0.0
    %v418 = vmax.f32 %v384, 0.0
    %v419 = vpack.c.bf16 %v388, %v387
    %v420 = vpack.c.bf16 %v390, %v389
    %v421 = vpack.c.bf16 %v392, %v391
    %v422 = vpack.c.bf16 %v394, %v393
    %v423 = vpack.c.bf16 %v396, %v395
    %v424 = vpack.c.bf16 %v398, %v397
    %v425 = vpack.c.bf16 %v400, %v399
    %v426 = vpack.c.bf16 %v402, %v401
    %v427 = vpack.c.bf16 %v404, %v403
    %v428 = vpack.c.bf16 %v406, %v405
    %v429 = vpack.c.bf16 %v408, %v407
    %v430 = vpack.c.bf16 %v410, %v409
    %v431 = vpack.c.bf16 %v412, %v411
    %v432 = vpack.c.bf16 %v414, %v413
    %v433 = vpack.c.bf16 %v416, %v415
    %v434 = vpack.c.bf16 %v418, %v417
    %v435 = vld [vmem:[#allocation2] sm:$0xf]
    %v436 = vld [vmem:[#allocation2 + $0x4] sm:$0xf]
    %v437 = vld [vmem:[#allocation2 + $0x8] sm:$0xf]
    %v438 = vld [vmem:[#allocation2 + $0xc] sm:$0xf]
    %v439 = vld [vmem:[#allocation2 + $0x10] sm:$0xf]
    %v440 = vld [vmem:[#allocation2 + $0x14] sm:$0xf]
    %v441 = vld [vmem:[#allocation2 + $0x18] sm:$0xf]
    %v442 = vld [vmem:[#allocation2 + $0x1c] sm:$0xf]
    %v443 = vld [vmem:[#allocation2 + $0x20] sm:$0xf]
    %v444 = vld [vmem:[#allocation2 + $0x24] sm:$0xf]
    %v445 = vld [vmem:[#allocation2 + $0x28] sm:$0xf]
    %v446 = vld [vmem:[#allocation2 + $0x2c] sm:$0xf]
    %v447 = vld [vmem:[#allocation2 + $0x30] sm:$0xf]
    %v448 = vld [vmem:[#allocation2 + $0x34] sm:$0xf]
    %v449 = vld [vmem:[#allocation2 + $0x38] sm:$0xf]
    %v450 = vld [vmem:[#allocation2 + $0x3c] sm:$0xf]
    %v451 = vld [vmem:[%s4] sm:$0x1]
    %v453 = vlaneseq
    %v454 = vshrl.u32 %v453, 7
    %v455 = vsub.s32 0, %v454
    %v456 = vrot.slane %v451, %v455
    %v474 = vunpack.c.l.b16 %v435
    %v475 = vunpack.c.l.b16 %v436
    %v476 = vunpack.c.l.b16 %v437
    %v477 = vunpack.c.l.b16 %v438
    %v478 = vunpack.c.l.b16 %v439
    %v479 = vunpack.c.l.b16 %v440
    %v480 = vunpack.c.l.b16 %v441
    %v481 = vunpack.c.l.b16 %v442
    %v482 = vunpack.c.l.b16 %v443
    %v483 = vunpack.c.l.b16 %v444
    %v484 = vunpack.c.l.b16 %v445
    %v485 = vunpack.c.l.b16 %v446
    %v486 = vunpack.c.l.b16 %v447
    %v487 = vunpack.c.l.b16 %v448
    %v488 = vunpack.c.l.b16 %v449
    %v489 = vunpack.c.l.b16 %v450
    %v490 = vpack.c.b16 %v475, %v474
    %v491 = vpack.c.b16 %v477, %v476
    %v492 = vpack.c.b16 %v479, %v478
    %v493 = vpack.c.b16 %v481, %v480
    %v494 = vpack.c.b16 %v483, %v482
    %v495 = vpack.c.b16 %v485, %v484
    %v496 = vpack.c.b16 %v487, %v486
    %v497 = vpack.c.b16 %v489, %v488
    %506 = vmatprep.subr.bf16.mxu0 0
    %507 = vmatpush1.bf16.msra.mxu0 %v490
    %508 = vmatprep.subr.bf16.mxu0 0
    %509 = vmatpush1.bf16.msra.mxu0 %v491
    %510 = vmatprep.subr.bf16.mxu0 0
    %511 = vmatpush1.bf16.msra.mxu0 %v492
    %512 = vmatprep.subr.bf16.mxu0 0
    %513 = vmatpush1.bf16.msra.mxu0 %v493
    %514 = vmatprep.subr.bf16.mxu0 0
    %515 = vmatpush1.bf16.msra.mxu0 %v494
    %516 = vmatprep.subr.bf16.mxu0 0
    %517 = vmatpush1.bf16.msra.mxu0 %v495
    %518 = vmatprep.subr.bf16.mxu0 0
    %519 = vmatpush1.bf16.msra.mxu0 %v496
    %520 = vmatprep.subr.bf16.mxu0 0
    %521 = vmatpush1.bf16.msra.mxu0 %v497
    %522 = vmatprep.subr.bf16.mxu0 0
    %523 = vmatpush1.bf16.msra.mxu0 0
    %524 = vmatprep.subr.bf16.mxu0 0
    %525 = vmatpush1.bf16.msra.mxu0 0
    %526 = vmatprep.subr.bf16.mxu0 0
    %527 = vmatpush1.bf16.msra.mxu0 0
    %528 = vmatprep.subr.bf16.mxu0 0
    %529 = vmatpush1.bf16.msra.mxu0 0
    %530 = vmatprep.subr.bf16.mxu0 0
    %531 = vmatpush1.bf16.msra.mxu0 0
    %532 = vmatprep.subr.bf16.mxu0 0
    %533 = vmatpush1.bf16.msra.mxu0 0
    %534 = vmatprep.subr.bf16.mxu0 0
    %535 = vmatpush1.bf16.msra.mxu0 0
    %536 = vmatprep.subr.bf16.mxu0 0
    %537 = vmatpush1.bf16.msra.mxu0 0
    %538 = vmatprep.mubr.bf16.mxu0 0
    %539 = vmatmul.mubr.bf16.gmra.mrb[0].mxu0 %v419
    %v540 = vpop.f32.mrb[0].mxu0
    %v541 = vadd.f32 %v456, %v540
    %v542 = vpop.f32.mrb[0].mxu0
    %v543 = vpop.f32.mrb[0].mxu0
    %v544 = vadd.f32 %v456, %v543
    %v545 = vpop.f32.mrb[0].mxu0
    %546 = vmatprep.mubr.bf16.mxu0 0
    %547 = vmatmul.mubr.bf16.gmra.mrb[0].mxu0 %v420
    %v548 = vpop.f32.mrb[0].mxu0
    %v549 = vadd.f32 %v456, %v548
    %v550 = vpop.f32.mrb[0].mxu0
    %v551 = vpop.f32.mrb[0].mxu0
    %v552 = vadd.f32 %v456, %v551
    %v553 = vpop.f32.mrb[0].mxu0
    %554 = vmatprep.mubr.bf16.mxu0 0
    %555 = vmatmul.mubr.bf16.gmra.mrb[0].mxu0 %v421
    %v556 = vpop.f32.mrb[0].mxu0
    %v557 = vadd.f32 %v456, %v556
    %v558 = vpop.f32.mrb[0].mxu0
    %v559 = vpop.f32.mrb[0].mxu0
    %v560 = vadd.f32 %v456, %v559
    %v561 = vpop.f32.mrb[0].mxu0
    %562 = vmatprep.mubr.bf16.mxu0 0
    %563 = vmatmul.mubr.bf16.gmra.mrb[0].mxu0 %v422
    %v564 = vpop.f32.mrb[0].mxu0
    %v565 = vadd.f32 %v456, %v564
    %v566 = vpop.f32.mrb[0].mxu0
    %v567 = vpop.f32.mrb[0].mxu0
    %v568 = vadd.f32 %v456, %v567
    %v569 = vpop.f32.mrb[0].mxu0
    %570 = vmatprep.mubr.bf16.mxu0 0
    %571 = vmatmul.mubr.bf16.gmra.mrb[0].mxu0 %v423
    %v572 = vpop.f32.mrb[0].mxu0
    %v573 = vadd.f32 %v456, %v572
    %v574 = vpop.f32.mrb[0].mxu0
    %v575 = vpop.f32.mrb[0].mxu0
    %v576 = vadd.f32 %v456, %v575
    %v577 = vpop.f32.mrb[0].mxu0
    %578 = vmatprep.mubr.bf16.mxu0 0
    %579 = vmatmul.mubr.bf16.gmra.mrb[0].mxu0 %v424
    %v580 = vpop.f32.mrb[0].mxu0
    %v581 = vadd.f32 %v456, %v580
    %v582 = vpop.f32.mrb[0].mxu0
    %v583 = vpop.f32.mrb[0].mxu0
    %v584 = vadd.f32 %v456, %v583
    %v585 = vpop.f32.mrb[0].mxu0
    %586 = vmatprep.mubr.bf16.mxu0 0
    %587 = vmatmul.mubr.bf16.gmra.mrb[0].mxu0 %v425
    %v588 = vpop.f32.mrb[0].mxu0
    %v589 = vadd.f32 %v456, %v588
    %v590 = vpop.f32.mrb[0].mxu0
    %v591 = vpop.f32.mrb[0].mxu0
    %v592 = vadd.f32 %v456, %v591
    %v593 = vpop.f32.mrb[0].mxu0
    %594 = vmatprep.mubr.bf16.mxu0 0
    %595 = vmatmul.mubr.bf16.gmra.mrb[0].mxu0 %v426
    %v596 = vpop.f32.mrb[0].mxu0
    %v597 = vadd.f32 %v456, %v596
    %v598 = vpop.f32.mrb[0].mxu0
    %v599 = vpop.f32.mrb[0].mxu0
    %v600 = vadd.f32 %v456, %v599
    %v601 = vpop.f32.mrb[0].mxu0
    %602 = vmatprep.mubr.bf16.mxu0 0
    %603 = vmatmul.mubr.bf16.gmra.mrb[0].mxu0 %v427
    %v604 = vpop.f32.mrb[0].mxu0
    %v605 = vadd.f32 %v456, %v604
    %v606 = vpop.f32.mrb[0].mxu0
    %v607 = vpop.f32.mrb[0].mxu0
    %v608 = vadd.f32 %v456, %v607
    %v609 = vpop.f32.mrb[0].mxu0
    %610 = vmatprep.mubr.bf16.mxu0 0
    %611 = vmatmul.mubr.bf16.gmra.mrb[0].mxu0 %v428
    %v612 = vpop.f32.mrb[0].mxu0
    %v613 = vadd.f32 %v456, %v612
    %v614 = vpop.f32.mrb[0].mxu0
    %v615 = vpop.f32.mrb[0].mxu0
    %v616 = vadd.f32 %v456, %v615
    %v617 = vpop.f32.mrb[0].mxu0
    %618 = vmatprep.mubr.bf16.mxu0 0
    %619 = vmatmul.mubr.bf16.gmra.mrb[0].mxu0 %v429
    %v620 = vpop.f32.mrb[0].mxu0
    %v621 = vadd.f32 %v456, %v620
    %v622 = vpop.f32.mrb[0].mxu0
    %v623 = vpop.f32.mrb[0].mxu0
    %v624 = vadd.f32 %v456, %v623
    %v625 = vpop.f32.mrb[0].mxu0
    %626 = vmatprep.mubr.bf16.mxu0 0
    %627 = vmatmul.mubr.bf16.gmra.mrb[0].mxu0 %v430
    %v628 = vpop.f32.mrb[0].mxu0
    %v629 = vadd.f32 %v456, %v628
    %v630 = vpop.f32.mrb[0].mxu0
    %v631 = vpop.f32.mrb[0].mxu0
    %v632 = vadd.f32 %v456, %v631
    %v633 = vpop.f32.mrb[0].mxu0
    %634 = vmatprep.mubr.bf16.mxu0 0
    %635 = vmatmul.mubr.bf16.gmra.mrb[0].mxu0 %v431
    %v636 = vpop.f32.mrb[0].mxu0
    %v637 = vadd.f32 %v456, %v636
    %v638 = vpop.f32.mrb[0].mxu0
    %v639 = vpop.f32.mrb[0].mxu0
    %v640 = vadd.f32 %v456, %v639
    %v641 = vpop.f32.mrb[0].mxu0
    %642 = vmatprep.mubr.bf16.mxu0 0
    %643 = vmatmul.mubr.bf16.gmra.mrb[0].mxu0 %v432
    %v644 = vpop.f32.mrb[0].mxu0
    %v645 = vadd.f32 %v456, %v644
    %v646 = vpop.f32.mrb[0].mxu0
    %v647 = vpop.f32.mrb[0].mxu0
    %v648 = vadd.f32 %v456, %v647
    %v649 = vpop.f32.mrb[0].mxu0
    %650 = vmatprep.mubr.bf16.mxu0 0
    %651 = vmatmul.mubr.bf16.gmra.mrb[0].mxu0 %v433
    %v652 = vpop.f32.mrb[0].mxu0
    %v653 = vadd.f32 %v456, %v652
    %v654 = vpop.f32.mrb[0].mxu0
    %v655 = vpop.f32.mrb[0].mxu0
    %v656 = vadd.f32 %v456, %v655
    %v657 = vpop.f32.mrb[0].mxu0
    %658 = vmatprep.mubr.bf16.mxu0 0
    %659 = vmatmul.mubr.bf16.gmra.mrb[0].mxu0 %v434
    %v660 = vpop.f32.mrb[0].mxu0
    %v661 = vadd.f32 %v456, %v660
    %v662 = vpop.f32.mrb[0].mxu0
    %v663 = vpop.f32.mrb[0].mxu0
    %v664 = vadd.f32 %v456, %v663
    %v665 = vpop.f32.mrb[0].mxu0
    %666 = vdwg.mxu0
    %v667 = vmax.f32 %v541, 0.0
    %v668 = vmax.f32 %v544, 0.0
    %v669 = vmax.f32 %v549, 0.0
    %v670 = vmax.f32 %v552, 0.0
    %v671 = vmax.f32 %v557, 0.0
    %v672 = vmax.f32 %v560, 0.0
    %v673 = vmax.f32 %v565, 0.0
    %v674 = vmax.f32 %v568, 0.0
    %v675 = vmax.f32 %v573, 0.0
    %v676 = vmax.f32 %v576, 0.0
    %v677 = vmax.f32 %v581, 0.0
    %v678 = vmax.f32 %v584, 0.0
    %v679 = vmax.f32 %v589, 0.0
    %v680 = vmax.f32 %v592, 0.0
    %v681 = vmax.f32 %v597, 0.0
    %v682 = vmax.f32 %v600, 0.0
    %v683 = vmax.f32 %v605, 0.0
    %v684 = vmax.f32 %v608, 0.0
    %v685 = vmax.f32 %v613, 0.0
    %v686 = vmax.f32 %v616, 0.0
    %v687 = vmax.f32 %v621, 0.0
    %v688 = vmax.f32 %v624, 0.0
    %v689 = vmax.f32 %v629, 0.0
    %v690 = vmax.f32 %v632, 0.0
    %v691 = vmax.f32 %v637, 0.0
    %v692 = vmax.f32 %v640, 0.0
    %v693 = vmax.f32 %v645, 0.0
    %v694 = vmax.f32 %v648, 0.0
    %v695 = vmax.f32 %v653, 0.0
    %v696 = vmax.f32 %v656, 0.0
    %v697 = vmax.f32 %v661, 0.0
    %v698 = vmax.f32 %v664, 0.0
    %v699 = vpack.c.bf16 %v668, %v667
    %v700 = vpack.c.bf16 %v670, %v669
    %v701 = vpack.c.bf16 %v672, %v671
    %v702 = vpack.c.bf16 %v674, %v673
    %v703 = vpack.c.bf16 %v676, %v675
    %v704 = vpack.c.bf16 %v678, %v677
    %v705 = vpack.c.bf16 %v680, %v679
    %v706 = vpack.c.bf16 %v682, %v681
    %v707 = vpack.c.bf16 %v684, %v683
    %v708 = vpack.c.bf16 %v686, %v685
    %v709 = vpack.c.bf16 %v688, %v687
    %v710 = vpack.c.bf16 %v690, %v689
    %v711 = vpack.c.bf16 %v692, %v691
    %v712 = vpack.c.bf16 %v694, %v693
    %v713 = vpack.c.bf16 %v696, %v695
    %v714 = vpack.c.bf16 %v698, %v697
    %v715 = vld [vmem:[%s5] sm:$0xff]
    %v716 = vld [vmem:[%s5 + $0x8] sm:$0xff]
    %v717 = vld [vmem:[%s5 + $0x10] sm:$0xff]
    %v718 = vld [vmem:[%s5 + $0x18] sm:$0xff]
    %v719 = vld [vmem:[%s5 + $0x20] sm:$0xff]
    %v720 = vld [vmem:[%s5 + $0x28] sm:$0xff]
    %v721 = vld [vmem:[%s5 + $0x30] sm:$0xff]
    %v722 = vld [vmem:[%s5 + $0x38] sm:$0xff]
    %v723 = vld [vmem:[%s5 + $0x40] sm:$0xff]
    %v724 = vld [vmem:[%s5 + $0x48] sm:$0xff]
    %v725 = vld [vmem:[%s5 + $0x50] sm:$0xff]
    %v726 = vld [vmem:[%s5 + $0x58] sm:$0xff]
    %v727 = vld [vmem:[%s5 + $0x60] sm:$0xff]
    %v728 = vld [vmem:[%s5 + $0x68] sm:$0xff]
    %v729 = vld [vmem:[%s5 + $0x70] sm:$0xff]
    %v730 = vld [vmem:[%s5 + $0x78] sm:$0xff]
    %v731 = vld [vmem:[%s6] sm:$0x3]
    %v733 = vlaneseq
    %v734 = vshrl.u32 %v733, 7
    %v735 = vsub.s32 0, %v734
    %v736 = vrot.slane %v731, %v735
    %v737 = vlaneseq
    %v738 = vshrl.u32 %v737, 7
    %v739 = vsub.s32 1, %v738
    %v740 = vrot.slane %v731, %v739
    %v759 = vunpack.c.l.b16 %v715
    %v760 = vunpack.c.h.b16 %v715
    %v761 = vunpack.c.l.b16 %v716
    %v762 = vunpack.c.h.b16 %v716
    %v763 = vunpack.c.l.b16 %v717
    %v764 = vunpack.c.h.b16 %v717
    %v765 = vunpack.c.l.b16 %v718
    %v766 = vunpack.c.h.b16 %v718
    %v767 = vunpack.c.l.b16 %v719
    %v768 = vunpack.c.h.b16 %v719
    %v769 = vunpack.c.l.b16 %v720
    %v770 = vunpack.c.h.b16 %v720
    %v771 = vunpack.c.l.b16 %v721
    %v772 = vunpack.c.h.b16 %v721
    %v773 = vunpack.c.l.b16 %v722
    %v774 = vunpack.c.h.b16 %v722
    %v775 = vunpack.c.l.b16 %v723
    %v776 = vunpack.c.h.b16 %v723
    %v777 = vunpack.c.l.b16 %v724
    %v778 = vunpack.c.h.b16 %v724
    %v779 = vunpack.c.l.b16 %v725
    %v780 = vunpack.c.h.b16 %v725
    %v781 = vunpack.c.l.b16 %v726
    %v782 = vunpack.c.h.b16 %v726
    %v783 = vunpack.c.l.b16 %v727
    %v784 = vunpack.c.h.b16 %v727
    %v785 = vunpack.c.l.b16 %v728
    %v786 = vunpack.c.h.b16 %v728
    %v787 = vunpack.c.l.b16 %v729
    %v788 = vunpack.c.h.b16 %v729
    %v789 = vunpack.c.l.b16 %v730
    %v790 = vunpack.c.h.b16 %v730
    %v791 = vpack.c.b16 %v761, %v759
    %v792 = vpack.c.b16 %v762, %v760
    %v793 = vpack.c.b16 %v765, %v763
    %v794 = vpack.c.b16 %v766, %v764
    %v795 = vpack.c.b16 %v769, %v767
    %v796 = vpack.c.b16 %v770, %v768
    %v797 = vpack.c.b16 %v773, %v771
    %v798 = vpack.c.b16 %v774, %v772
    %v799 = vpack.c.b16 %v777, %v775
    %v800 = vpack.c.b16 %v778, %v776
    %v801 = vpack.c.b16 %v781, %v779
    %v802 = vpack.c.b16 %v782, %v780
    %v803 = vpack.c.b16 %v785, %v783
    %v804 = vpack.c.b16 %v786, %v784
    %v805 = vpack.c.b16 %v789, %v787
    %v806 = vpack.c.b16 %v790, %v788
    %823 = vmatprep.subr.bf16.mxu0 %v792
    %824 = vmatpush1.bf16.msra.mxu0 %v791
    %825 = vmatprep.subr.bf16.mxu0 %v794
    %826 = vmatpush1.bf16.msra.mxu0 %v793
    %827 = vmatprep.subr.bf16.mxu0 %v796
    %828 = vmatpush1.bf16.msra.mxu0 %v795
    %829 = vmatprep.subr.bf16.mxu0 %v798
    %830 = vmatpush1.bf16.msra.mxu0 %v797
    %831 = vmatprep.subr.bf16.mxu0 %v800
    %832 = vmatpush1.bf16.msra.mxu0 %v799
    %833 = vmatprep.subr.bf16.mxu0 %v802
    %834 = vmatpush1.bf16.msra.mxu0 %v801
    %835 = vmatprep.subr.bf16.mxu0 %v804
    %836 = vmatpush1.bf16.msra.mxu0 %v803
    %837 = vmatprep.subr.bf16.mxu0 %v806
    %838 = vmatpush1.bf16.msra.mxu0 %v805
    %839 = vmatprep.subr.bf16.mxu0 0
    %840 = vmatpush1.bf16.msra.mxu0 0
    %841 = vmatprep.subr.bf16.mxu0 0
    %842 = vmatpush1.bf16.msra.mxu0 0
    %843 = vmatprep.subr.bf16.mxu0 0
    %844 = vmatpush1.bf16.msra.mxu0 0
    %845 = vmatprep.subr.bf16.mxu0 0
    %846 = vmatpush1.bf16.msra.mxu0 0
    %847 = vmatprep.subr.bf16.mxu0 0
    %848 = vmatpush1.bf16.msra.mxu0 0
    %849 = vmatprep.subr.bf16.mxu0 0
    %850 = vmatpush1.bf16.msra.mxu0 0
    %851 = vmatprep.subr.bf16.mxu0 0
    %852 = vmatpush1.bf16.msra.mxu0 0
    %853 = vmatprep.subr.bf16.mxu0 0
    %854 = vmatpush1.bf16.msra.mxu0 0
    %855 = vmatprep.mubr.bf16.mxu0 0
    %856 = vmatmul.mubr.bf16.gmra.mrb[0].mxu0 %v699
    %v857 = vpop.f32.mrb[0].mxu0
    %v858 = vadd.f32 %v736, %v857
    %v859 = vpop.f32.mrb[0].mxu0
    %v860 = vadd.f32 %v740, %v859
    %v861 = vpop.f32.mrb[0].mxu0
    %v862 = vadd.f32 %v736, %v861
    %v863 = vpop.f32.mrb[0].mxu0
    %v864 = vadd.f32 %v740, %v863
    %865 = vmatprep.mubr.bf16.mxu0 0
    %866 = vmatmul.mubr.bf16.gmra.mrb[0].mxu0 %v700
    %v867 = vpop.f32.mrb[0].mxu0
    %v868 = vadd.f32 %v736, %v867
    %v869 = vpop.f32.mrb[0].mxu0
    %v870 = vadd.f32 %v740, %v869
    %v871 = vpop.f32.mrb[0].mxu0
    %v872 = vadd.f32 %v736, %v871
    %v873 = vpop.f32.mrb[0].mxu0
    %v874 = vadd.f32 %v740, %v873
    %875 = vmatprep.mubr.bf16.mxu0 0
    %876 = vmatmul.mubr.bf16.gmra.mrb[0].mxu0 %v701
    %v877 = vpop.f32.mrb[0].mxu0
    %v878 = vadd.f32 %v736, %v877
    %v879 = vpop.f32.mrb[0].mxu0
    %v880 = vadd.f32 %v740, %v879
    %v881 = vpop.f32.mrb[0].mxu0
    %v882 = vadd.f32 %v736, %v881
    %v883 = vpop.f32.mrb[0].mxu0
    %v884 = vadd.f32 %v740, %v883
    %885 = vmatprep.mubr.bf16.mxu0 0
    %886 = vmatmul.mubr.bf16.gmra.mrb[0].mxu0 %v702
    %v887 = vpop.f32.mrb[0].mxu0
    %v888 = vadd.f32 %v736, %v887
    %v889 = vpop.f32.mrb[0].mxu0
    %v890 = vadd.f32 %v740, %v889
    %v891 = vpop.f32.mrb[0].mxu0
    %v892 = vadd.f32 %v736, %v891
    %v893 = vpop.f32.mrb[0].mxu0
    %v894 = vadd.f32 %v740, %v893
    %895 = vmatprep.mubr.bf16.mxu0 0
    %896 = vmatmul.mubr.bf16.gmra.mrb[0].mxu0 %v703
    %v897 = vpop.f32.mrb[0].mxu0
    %v898 = vadd.f32 %v736, %v897
    %v899 = vpop.f32.mrb[0].mxu0
    %v900 = vadd.f32 %v740, %v899
    %v901 = vpop.f32.mrb[0].mxu0
    %v902 = vadd.f32 %v736, %v901
    %v903 = vpop.f32.mrb[0].mxu0
    %v904 = vadd.f32 %v740, %v903
    %905 = vmatprep.mubr.bf16.mxu0 0
    %906 = vmatmul.mubr.bf16.gmra.mrb[0].mxu0 %v704
    %v907 = vpop.f32.mrb[0].mxu0
    %v908 = vadd.f32 %v736, %v907
    %v909 = vpop.f32.mrb[0].mxu0
    %v910 = vadd.f32 %v740, %v909
    %v911 = vpop.f32.mrb[0].mxu0
    %v912 = vadd.f32 %v736, %v911
    %v913 = vpop.f32.mrb[0].mxu0
    %v914 = vadd.f32 %v740, %v913
    %915 = vmatprep.mubr.bf16.mxu0 0
    %916 = vmatmul.mubr.bf16.gmra.mrb[0].mxu0 %v705
    %v917 = vpop.f32.mrb[0].mxu0
    %v918 = vadd.f32 %v736, %v917
    %v919 = vpop.f32.mrb[0].mxu0
    %v920 = vadd.f32 %v740, %v919
    %v921 = vpop.f32.mrb[0].mxu0
    %v922 = vadd.f32 %v736, %v921
    %v923 = vpop.f32.mrb[0].mxu0
    %v924 = vadd.f32 %v740, %v923
    %925 = vmatprep.mubr.bf16.mxu0 0
    %926 = vmatmul.mubr.bf16.gmra.mrb[0].mxu0 %v706
    %v927 = vpop.f32.mrb[0].mxu0
    %v928 = vadd.f32 %v736, %v927
    %v929 = vpop.f32.mrb[0].mxu0
    %v930 = vadd.f32 %v740, %v929
    %v931 = vpop.f32.mrb[0].mxu0
    %v932 = vadd.f32 %v736, %v931
    %v933 = vpop.f32.mrb[0].mxu0
    %v934 = vadd.f32 %v740, %v933
    %935 = vmatprep.mubr.bf16.mxu0 0
    %936 = vmatmul.mubr.bf16.gmra.mrb[0].mxu0 %v707
    %v937 = vpop.f32.mrb[0].mxu0
    %v938 = vadd.f32 %v736, %v937
    %v939 = vpop.f32.mrb[0].mxu0
    %v940 = vadd.f32 %v740, %v939
    %v941 = vpop.f32.mrb[0].mxu0
    %v942 = vadd.f32 %v736, %v941
    %v943 = vpop.f32.mrb[0].mxu0
    %v944 = vadd.f32 %v740, %v943
    %945 = vmatprep.mubr.bf16.mxu0 0
    %946 = vmatmul.mubr.bf16.gmra.mrb[0].mxu0 %v708
    %v947 = vpop.f32.mrb[0].mxu0
    %v948 = vadd.f32 %v736, %v947
    %v949 = vpop.f32.mrb[0].mxu0
    %v950 = vadd.f32 %v740, %v949
    %v951 = vpop.f32.mrb[0].mxu0
    %v952 = vadd.f32 %v736, %v951
    %v953 = vpop.f32.mrb[0].mxu0
    %v954 = vadd.f32 %v740, %v953
    %955 = vmatprep.mubr.bf16.mxu0 0
    %956 = vmatmul.mubr.bf16.gmra.mrb[0].mxu0 %v709
    %v957 = vpop.f32.mrb[0].mxu0
    %v958 = vadd.f32 %v736, %v957
    %v959 = vpop.f32.mrb[0].mxu0
    %v960 = vadd.f32 %v740, %v959
    %v961 = vpop.f32.mrb[0].mxu0
    %v962 = vadd.f32 %v736, %v961
    %v963 = vpop.f32.mrb[0].mxu0
    %v964 = vadd.f32 %v740, %v963
    %965 = vmatprep.mubr.bf16.mxu0 0
    %966 = vmatmul.mubr.bf16.gmra.mrb[0].mxu0 %v710
    %v967 = vpop.f32.mrb[0].mxu0
    %v968 = vadd.f32 %v736, %v967
    %v969 = vpop.f32.mrb[0].mxu0
    %v970 = vadd.f32 %v740, %v969
    %v971 = vpop.f32.mrb[0].mxu0
    %v972 = vadd.f32 %v736, %v971
    %v973 = vpop.f32.mrb[0].mxu0
    %v974 = vadd.f32 %v740, %v973
    %975 = vmatprep.mubr.bf16.mxu0 0
    %976 = vmatmul.mubr.bf16.gmra.mrb[0].mxu0 %v711
    %v977 = vpop.f32.mrb[0].mxu0
    %v978 = vadd.f32 %v736, %v977
    %v979 = vpop.f32.mrb[0].mxu0
    %v980 = vadd.f32 %v740, %v979
    %v981 = vpop.f32.mrb[0].mxu0
    %v982 = vadd.f32 %v736, %v981
    %v983 = vpop.f32.mrb[0].mxu0
    %v984 = vadd.f32 %v740, %v983
    %985 = vmatprep.mubr.bf16.mxu0 0
    %986 = vmatmul.mubr.bf16.gmra.mrb[0].mxu0 %v712
    %v987 = vpop.f32.mrb[0].mxu0
    %v988 = vadd.f32 %v736, %v987
    %v989 = vpop.f32.mrb[0].mxu0
    %v990 = vadd.f32 %v740, %v989
    %v991 = vpop.f32.mrb[0].mxu0
    %v992 = vadd.f32 %v736, %v991
    %v993 = vpop.f32.mrb[0].mxu0
    %v994 = vadd.f32 %v740, %v993
    %995 = vmatprep.mubr.bf16.mxu0 0
    %996 = vmatmul.mubr.bf16.gmra.mrb[0].mxu0 %v713
    %v997 = vpop.f32.mrb[0].mxu0
    %v998 = vadd.f32 %v736, %v997
    %v999 = vpop.f32.mrb[0].mxu0
    %v1000 = vadd.f32 %v740, %v999
    %v1001 = vpop.f32.mrb[0].mxu0
    %v1002 = vadd.f32 %v736, %v1001
    %v1003 = vpop.f32.mrb[0].mxu0
    %v1004 = vadd.f32 %v740, %v1003
    %1005 = vmatprep.mubr.bf16.mxu0 0
    %1006 = vmatmul.mubr.bf16.gmra.mrb[0].mxu0 %v714
    %v1007 = vpop.f32.mrb[0].mxu0
    %v1008 = vadd.f32 %v736, %v1007
    %v1009 = vpop.f32.mrb[0].mxu0
    %v1010 = vadd.f32 %v740, %v1009
    %v1011 = vpop.f32.mrb[0].mxu0
    %v1012 = vadd.f32 %v736, %v1011
    %v1013 = vpop.f32.mrb[0].mxu0
    %v1014 = vadd.f32 %v740, %v1013
    %1015 = vdwg.mxu0
    %v1016 = vmax.f32 %v858, 0.0
    %v1017 = vmax.f32 %v860, 0.0
    %v1018 = vmax.f32 %v862, 0.0
    %v1019 = vmax.f32 %v864, 0.0
    %v1020 = vmax.f32 %v868, 0.0
    %v1021 = vmax.f32 %v870, 0.0
    %v1022 = vmax.f32 %v872, 0.0
    %v1023 = vmax.f32 %v874, 0.0
    %v1024 = vmax.f32 %v878, 0.0
    %v1025 = vmax.f32 %v880, 0.0
    %v1026 = vmax.f32 %v882, 0.0
    %v1027 = vmax.f32 %v884, 0.0
    %v1028 = vmax.f32 %v888, 0.0
    %v1029 = vmax.f32 %v890, 0.0
    %v1030 = vmax.f32 %v892, 0.0
    %v1031 = vmax.f32 %v894, 0.0
    %v1032 = vmax.f32 %v898, 0.0
    %v1033 = vmax.f32 %v900, 0.0
    %v1034 = vmax.f32 %v902, 0.0
    %v1035 = vmax.f32 %v904, 0.0
    %v1036 = vmax.f32 %v908, 0.0
    %v1037 = vmax.f32 %v910, 0.0
    %v1038 = vmax.f32 %v912, 0.0
    %v1039 = vmax.f32 %v914, 0.0
    %v1040 = vmax.f32 %v918, 0.0
    %v1041 = vmax.f32 %v920, 0.0
    %v1042 = vmax.f32 %v922, 0.0
    %v1043 = vmax.f32 %v924, 0.0
    %v1044 = vmax.f32 %v928, 0.0
    %v1045 = vmax.f32 %v930, 0.0
    %v1046 = vmax.f32 %v932, 0.0
    %v1047 = vmax.f32 %v934, 0.0
    %v1048 = vmax.f32 %v938, 0.0
    %v1049 = vmax.f32 %v940, 0.0
    %v1050 = vmax.f32 %v942, 0.0
    %v1051 = vmax.f32 %v944, 0.0
    %v1052 = vmax.f32 %v948, 0.0
    %v1053 = vmax.f32 %v950, 0.0
    %v1054 = vmax.f32 %v952, 0.0
    %v1055 = vmax.f32 %v954, 0.0
    %v1056 = vmax.f32 %v958, 0.0
    %v1057 = vmax.f32 %v960, 0.0
    %v1058 = vmax.f32 %v962, 0.0
    %v1059 = vmax.f32 %v964, 0.0
    %v1060 = vmax.f32 %v968, 0.0
    %v1061 = vmax.f32 %v970, 0.0
    %v1062 = vmax.f32 %v972, 0.0
    %v1063 = vmax.f32 %v974, 0.0
    %v1064 = vmax.f32 %v978, 0.0
    %v1065 = vmax.f32 %v980, 0.0
    %v1066 = vmax.f32 %v982, 0.0
    %v1067 = vmax.f32 %v984, 0.0
    %v1068 = vmax.f32 %v988, 0.0
    %v1069 = vmax.f32 %v990, 0.0
    %v1070 = vmax.f32 %v992, 0.0
    %v1071 = vmax.f32 %v994, 0.0
    %v1072 = vmax.f32 %v998, 0.0
    %v1073 = vmax.f32 %v1000, 0.0
    %v1074 = vmax.f32 %v1002, 0.0
    %v1075 = vmax.f32 %v1004, 0.0
    %v1076 = vmax.f32 %v1008, 0.0
    %v1077 = vmax.f32 %v1010, 0.0
    %v1078 = vmax.f32 %v1012, 0.0
    %v1079 = vmax.f32 %v1014, 0.0
    %1080 = vst [vmem:[#allocation5] sm:$0xff] %v1016
    %1081 = vst [vmem:[#allocation5 + $0x8] sm:$0xff] %v1017
    %1082 = vst [vmem:[#allocation5 + $0x10] sm:$0xff] %v1018
    %1083 = vst [vmem:[#allocation5 + $0x18] sm:$0xff] %v1019
    %1084 = vst [vmem:[#allocation5 + $0x20] sm:$0xff] %v1020
    %1085 = vst [vmem:[#allocation5 + $0x28] sm:$0xff] %v1021
    %1086 = vst [vmem:[#allocation5 + $0x30] sm:$0xff] %v1022
    %1087 = vst [vmem:[#allocation5 + $0x38] sm:$0xff] %v1023
    %1088 = vst [vmem:[#allocation5 + $0x40] sm:$0xff] %v1024
    %1089 = vst [vmem:[#allocation5 + $0x48] sm:$0xff] %v1025
    %1090 = vst [vmem:[#allocation5 + $0x50] sm:$0xff] %v1026
    %1091 = vst [vmem:[#allocation5 + $0x58] sm:$0xff] %v1027
    %1092 = vst [vmem:[#allocation5 + $0x60] sm:$0xff] %v1028
    %1093 = vst [vmem:[#allocation5 + $0x68] sm:$0xff] %v1029
    %1094 = vst [vmem:[#allocation5 + $0x70] sm:$0xff] %v1030
    %1095 = vst [vmem:[#allocation5 + $0x78] sm:$0xff] %v1031
    %1096 = vst [vmem:[#allocation5 + $0x80] sm:$0xff] %v1032
    %1097 = vst [vmem:[#allocation5 + $0x88] sm:$0xff] %v1033
    %1098 = vst [vmem:[#allocation5 + $0x90] sm:$0xff] %v1034
    %1099 = vst [vmem:[#allocation5 + $0x98] sm:$0xff] %v1035
    %1100 = vst [vmem:[#allocation5 + $0xa0] sm:$0xff] %v1036
    %1101 = vst [vmem:[#allocation5 + $0xa8] sm:$0xff] %v1037
    %1102 = vst [vmem:[#allocation5 + $0xb0] sm:$0xff] %v1038
    %1103 = vst [vmem:[#allocation5 + $0xb8] sm:$0xff] %v1039
    %1104 = vst [vmem:[#allocation5 + $0xc0] sm:$0xff] %v1040
    %1105 = vst [vmem:[#allocation5 + $0xc8] sm:$0xff] %v1041
    %1106 = vst [vmem:[#allocation5 + $0xd0] sm:$0xff] %v1042
    %1107 = vst [vmem:[#allocation5 + $0xd8] sm:$0xff] %v1043
    %1108 = vst [vmem:[#allocation5 + $0xe0] sm:$0xff] %v1044
    %1109 = vst [vmem:[#allocation5 + $0xe8] sm:$0xff] %v1045
    %1110 = vst [vmem:[#allocation5 + $0xf0] sm:$0xff] %v1046
    %1111 = vst [vmem:[#allocation5 + $0xf8] sm:$0xff] %v1047
    %1112 = vst [vmem:[#allocation5 + $0x100] sm:$0xff] %v1048
    %1113 = vst [vmem:[#allocation5 + $0x108] sm:$0xff] %v1049
    %1114 = vst [vmem:[#allocation5 + $0x110] sm:$0xff] %v1050
    %1115 = vst [vmem:[#allocation5 + $0x118] sm:$0xff] %v1051
    %1116 = vst [vmem:[#allocation5 + $0x120] sm:$0xff] %v1052
    %1117 = vst [vmem:[#allocation5 + $0x128] sm:$0xff] %v1053
    %1118 = vst [vmem:[#allocation5 + $0x130] sm:$0xff] %v1054
    %1119 = vst [vmem:[#allocation5 + $0x138] sm:$0xff] %v1055
    %1120 = vst [vmem:[#allocation5 + $0x140] sm:$0xff] %v1056
    %1121 = vst [vmem:[#allocation5 + $0x148] sm:$0xff] %v1057
    %1122 = vst [vmem:[#allocation5 + $0x150] sm:$0xff] %v1058
    %1123 = vst [vmem:[#allocation5 + $0x158] sm:$0xff] %v1059
    %1124 = vst [vmem:[#allocation5 + $0x160] sm:$0xff] %v1060
    %1125 = vst [vmem:[#allocation5 + $0x168] sm:$0xff] %v1061
    %1126 = vst [vmem:[#allocation5 + $0x170] sm:$0xff] %v1062
    %1127 = vst [vmem:[#allocation5 + $0x178] sm:$0xff] %v1063
    %1128 = vst [vmem:[#allocation5 + $0x180] sm:$0xff] %v1064
    %1129 = vst [vmem:[#allocation5 + $0x188] sm:$0xff] %v1065
    %1130 = vst [vmem:[#allocation5 + $0x190] sm:$0xff] %v1066
    %1131 = vst [vmem:[#allocation5 + $0x198] sm:$0xff] %v1067
    %1132 = vst [vmem:[#allocation5 + $0x1a0] sm:$0xff] %v1068
    %1133 = vst [vmem:[#allocation5 + $0x1a8] sm:$0xff] %v1069
    %1134 = vst [vmem:[#allocation5 + $0x1b0] sm:$0xff] %v1070
    %1135 = vst [vmem:[#allocation5 + $0x1b8] sm:$0xff] %v1071
    %1136 = vst [vmem:[#allocation5 + $0x1c0] sm:$0xff] %v1072
    %1137 = vst [vmem:[#allocation5 + $0x1c8] sm:$0xff] %v1073
    %1138 = vst [vmem:[#allocation5 + $0x1d0] sm:$0xff] %v1074
    %1139 = vst [vmem:[#allocation5 + $0x1d8] sm:$0xff] %v1075
    %1140 = vst [vmem:[#allocation5 + $0x1e0] sm:$0xff] %v1076
    %1141 = vst [vmem:[#allocation5 + $0x1e8] sm:$0xff] %v1077
    %1142 = vst [vmem:[#allocation5 + $0x1f0] sm:$0xff] %v1078
    %1143 = vst [vmem:[#allocation5 + $0x1f8] sm:$0xff] %v1079
    // Predicated region
    $region34: #{tpu_custom_call.1} parent=1 // pred_check
      _
    $region35: #{tpu_custom_call.1} parent=1 // pred_check_branch
      %1145 = sbr.rel (0) target = $region37
    $region36: #{tpu_custom_call.1} parent=1 // pred_region
      %s1147 = ssub.s32 8192, 8192
      %1148 = vsyncadd [#allocation4], %s1147
      %s1149 = sshll.u32 [#allocation5], 4
      %s1150 = int_to_ptr.vmem [resolvable:$true] %s1149
      %1155 = dma.vmem_to_hbm [thread:$0]  %s1150, 8192, %s7, [#allocation4], 256, 256, 16
    $region37: #{tpu_custom_call.1} parent=1 // pred_fallthru
      _
    // Predicated region
    $region38: #{tpu_custom_call.1} parent=1 // pred_check
      _
    $region39: #{tpu_custom_call.1} parent=1 // pred_check_branch
      %1157 = sbr.rel (0) target = $region41
    $region40: #{tpu_custom_call.1} parent=1 // pred_region
      %1158 = dma.done [#allocation4], 8192
    $region41: #{tpu_custom_call.1} parent=1 // pred_fallthru
      _
    %1159 = vsyncpa [#allocation3], 1
    %1160 = vsyncpa [#allocation4], 1

// kernel: tpu_custom_call.1
$region0: #{tpu_custom_call.1}
  #allocation0 [shape = 'u32[]', space=smem, size = 0x4, offset = 0x4, fixed_abs, tag = 'smem constant byte address 0x4 - core index']
  #allocation1 [shape = 'u32[144,128]{1,0:T(1,128)}', space=vmem, size = 0x12000, scoped, tag = 'internal scratch']
  %s0 = inlined_call_operand.vmem [shape: bf16[256,32], index: 0, kind: input, shape index: {}]
  %s1 = inlined_call_operand.vmem [shape: bf16[32,128], index: 1, kind: input, shape index: {}]
  %s2 = inlined_call_operand.vmem [shape: f32[1,128], index: 2, kind: input, shape index: {}]
  %s3 = inlined_call_operand.hbm [shape: bf16[128,128], index: 3, kind: input, shape index: {}]
  %s4 = inlined_call_operand.vmem [shape: f32[1,128], index: 4, kind: input, shape index: {}]
  %s5 = inlined_call_operand.vmem [shape: bf16[128,256], index: 5, kind: input, shape index: {}]
  %s6 = inlined_call_operand.vmem [shape: f32[1,256], index: 6, kind: input, shape index: {}]
  %s7 = inlined_call_operand.hbm [shape: f32[256,256], index: 7, kind: output, shape index: {}]
  %s8 = sld [smem:[#allocation0]]
  $region42: #{tpu_custom_call.1} parent=0
    _
  %s10 = ssub.s32 1, %s8
  %s11 = scalar_select 0, %s10, %s8
  $region1: #{tpu_custom_call.1} parent=0
    #allocation2 [shape = 'u8[32768]{0}', space=vmem, size = 0x8000, scoped, tag = 'input window, operand 3, single buffered']
    #allocation3 [shape = 's32[1]{0}', space=sflag, size = 0x4, scoped, tag = 'scoped memory for tpu_custom_call.1']
    #allocation4 [shape = 's32[1]{0}', space=sflag, size = 0x4, scoped, tag = 'scoped memory for tpu_custom_call.1']
    #allocation5 [shape = 'u8[262144]{0}', space=vmem, size = 0x40000, scoped, tag = 'output window, operand 0, single buffered']
    %12 = vsyncpa [#allocation3], 0
    %13 = vsyncpa [#allocation4], 0
    // Predicated region
    $region2: #{tpu_custom_call.1} parent=1 // pred_check
      _
    $region3: #{tpu_custom_call.1} parent=1 // pred_check_branch
      %15 = sbr.rel (0) target = $region5
    $region4: #{tpu_custom_call.1} parent=1 // pred_region
      _
    $region5: #{tpu_custom_call.1} parent=1 // pred_fallthru
      _
    // Predicated region
    $region6: #{tpu_custom_call.1} parent=1 // pred_check
      _
    $region7: #{tpu_custom_call.1} parent=1 // pred_check_branch
      %17 = sbr.rel (0) target = $region9
    $region8: #{tpu_custom_call.1} parent=1 // pred_region
      _
    $region9: #{tpu_custom_call.1} parent=1 // pred_fallthru
      _
    // Predicated region
    $region10: #{tpu_custom_call.1} parent=1 // pred_check
      _
    $region11: #{tpu_custom_call.1} parent=1 // pred_check_branch
      %19 = sbr.rel (0) target = $region13
    $region12: #{tpu_custom_call.1} parent=1 // pred_region
      _
    $region13: #{tpu_custom_call.1} parent=1 // pred_fallthru
      _
    // Predicated region
    $region14: #{tpu_custom_call.1} parent=1 // pred_check
      _
    $region15: #{tpu_custom_call.1} parent=1 // pred_check_branch
      %21 = sbr.rel (0) target = $region17
    $region16: #{tpu_custom_call.1} parent=1 // pred_region
      %s23 = ssub.s32 1024, 1024
      %24 = vsyncadd [#allocation3], %s23
      %s25 = sshll.u32 [#allocation2], 4
      %s26 = int_to_ptr.vmem [resolvable:$true] %s25
      %31 = dma.hbm_to_vmem [thread:$0]  %s3, 1024, %s26, [#allocation3], 64, 64, 4
    $region17: #{tpu_custom_call.1} parent=1 // pred_fallthru
      _
    // Predicated region
    $region18: #{tpu_custom_call.1} parent=1 // pred_check
      _
    $region19: #{tpu_custom_call.1} parent=1 // pred_check_branch
      %33 = sbr.rel (0) target = $region21
    $region20: #{tpu_custom_call.1} parent=1 // pred_region
      _
    $region21: #{tpu_custom_call.1} parent=1 // pred_fallthru
      _
    // Predicated region
    $region22: #{tpu_custom_call.1} parent=1 // pred_check
      _
    $region23: #{tpu_custom_call.1} parent=1 // pred_check_branch
      %35 = sbr.rel (0) target = $region25
    $region24: #{tpu_custom_call.1} parent=1 // pred_region
      _
    $region25: #{tpu_custom_call.1} parent=1 // pred_fallthru
      _
    // Predicated region
    $region26: #{tpu_custom_call.1} parent=1 // pred_check
      _
    $region27: #{tpu_custom_call.1} parent=1 // pred_check_branch
      %37 = sbr.rel (0) target = $region29
    $region28: #{tpu_custom_call.1} parent=1 // pred_region
      _
    $region29: #{tpu_custom_call.1} parent=1 // pred_fallthru
      _
    // Predicated region
    $region30: #{tpu_custom_call.1} parent=1 // pred_check
      _
    $region31: #{tpu_custom_call.1} parent=1 // pred_check_branch
      %39 = sbr.rel (0) target = $region33
    $region32: #{tpu_custom_call.1} parent=1 // pred_region
      %40 = dma.done [#allocation3], 1024
    $region33: #{tpu_custom_call.1} parent=1 // pred_fallthru
      _
    %v42 = vld [vmem:[%s0] sm:$0xf]
    %v43 = vld [vmem:[%s0 + $0x4] sm:$0xf]
    %v44 = vld [vmem:[%s0 + $0x8] sm:$0xf]
    %v45 = vld [vmem:[%s0 + $0xc] sm:$0xf]
    %v46 = vld [vmem:[%s0 + $0x10] sm:$0xf]
    %v47 = vld [vmem:[%s0 + $0x14] sm:$0xf]
    %v48 = vld [vmem:[%s0 + $0x18] sm:$0xf]
    %v49 = vld [vmem:[%s0 + $0x1c] sm:$0xf]
    %v50 = vld [vmem:[%s0 + $0x20] sm:$0xf]
    %v51 = vld [vmem:[%s0 + $0x24] sm:$0xf]
    %v52 = vld [vmem:[%s0 + $0x28] sm:$0xf]
    %v53 = vld [vmem:[%s0 + $0x2c] sm:$0xf]
    %v54 = vld [vmem:[%s0 + $0x30] sm:$0xf]
    %v55 = vld [vmem:[%s0 + $0x34] sm:$0xf]
    %v56 = vld [vmem:[%s0 + $0x38] sm:$0xf]
    %v57 = vld [vmem:[%s0 + $0x3c] sm:$0xf]
    %v58 = vld [vmem:[%s0 + $0x40] sm:$0xf]
    %v59 = vld [vmem:[%s0 + $0x44] sm:$0xf]
    %v60 = vld [vmem:[%s0 + $0x48] sm:$0xf]
    %v61 = vld [vmem:[%s0 + $0x4c] sm:$0xf]
    %v62 = vld [vmem:[%s0 + $0x50] sm:$0xf]
    %v63 = vld [vmem:[%s0 + $0x54] sm:$0xf]
    %v64 = vld [vmem:[%s0 + $0x58] sm:$0xf]
    %v65 = vld [vmem:[%s0 + $0x5c] sm:$0xf]
    %v66 = vld [vmem:[%s0 + $0x60] sm:$0xf]
    %v67 = vld [vmem:[%s0 + $0x64] sm:$0xf]
    %v68 = vld [vmem:[%s0 + $0x68] sm:$0xf]
    %v69 = vld [vmem:[%s0 + $0x6c] sm:$0xf]
    %v70 = vld [vmem:[%s0 + $0x70] sm:$0xf]
    %v71 = vld [vmem:[%s0 + $0x74] sm:$0xf]
    %v72 = vld [vmem:[%s0 + $0x78] sm:$0xf]
    %v73 = vld [vmem:[%s0 + $0x7c] sm:$0xf]
    %v74 = vld [vmem:[%s1] sm:$0xf]
    %v75 = vld [vmem:[%s1 + $0x4] sm:$0xf]
    %v76 = vld [vmem:[%s1 + $0x8] sm:$0xf]
    %v77 = vld [vmem:[%s1 + $0xc] sm:$0xf]
    %v78 = vld [vmem:[%s2] sm:$0x1]
    %v80 = vlaneseq
    %v81 = vshrl.u32 %v80, 7
    %v82 = vsub.s32 0, %v81
    %v83 = vrot.slane %v78, %v82
    %v117 = vunpack.c.l.b16 %v42
    %v118 = vunpack.c.l.b16 %v43
    %v119 = vunpack.c.l.b16 %v44
    %v120 = vunpack.c.l.b16 %v45
    %v121 = vunpack.c.l.b16 %v46
    %v122 = vunpack.c.l.b16 %v47
    %v123 = vunpack.c.l.b16 %v48
    %v124 = vunpack.c.l.b16 %v49
    %v125 = vunpack.c.l.b16 %v50
    %v126 = vunpack.c.l.b16 %v51
    %v127 = vunpack.c.l.b16 %v52
    %v128 = vunpack.c.l.b16 %v53
    %v129 = vunpack.c.l.b16 %v54
    %v130 = vunpack.c.l.b16 %v55
    %v131 = vunpack.c.l.b16 %v56
    %v132 = vunpack.c.l.b16 %v57
    %v133 = vunpack.c.l.b16 %v58
    %v134 = vunpack.c.l.b16 %v59
    %v135 = vunpack.c.l.b16 %v60
    %v136 = vunpack.c.l.b16 %v61
    %v137 = vunpack.c.l.b16 %v62
    %v138 = vunpack.c.l.b16 %v63
    %v139 = vunpack.c.l.b16 %v64
    %v140 = vunpack.c.l.b16 %v65
    %v141 = vunpack.c.l.b16 %v66
    %v142 = vunpack.c.l.b16 %v67
    %v143 = vunpack.c.l.b16 %v68
    %v144 = vunpack.c.l.b16 %v69
    %v145 = vunpack.c.l.b16 %v70
    %v146 = vunpack.c.l.b16 %v71
    %v147 = vunpack.c.l.b16 %v72
    %v148 = vunpack.c.l.b16 %v73
    %v149 = vpack.c.b16 %v118, %v117
    %v150 = vpack.c.b16 %v120, %v119
    %v151 = vpack.c.b16 %v122, %v121
    %v152 = vpack.c.b16 %v124, %v123
    %v153 = vpack.c.b16 %v126, %v125
    %v154 = vpack.c.b16 %v128, %v127
    %v155 = vpack.c.b16 %v130, %v129
    %v156 = vpack.c.b16 %v132, %v131
    %v157 = vpack.c.b16 %v134, %v133
    %v158 = vpack.c.b16 %v136, %v135
    %v159 = vpack.c.b16 %v138, %v137
    %v160 = vpack.c.b16 %v140, %v139
    %v161 = vpack.c.b16 %v142, %v141
    %v162 = vpack.c.b16 %v144, %v143
    %v163 = vpack.c.b16 %v146, %v145
    %v164 = vpack.c.b16 %v148, %v147
    %v169 = vunpack.c.l.b16 %v74
    %v170 = vunpack.c.l.b16 %v75
    %v171 = vunpack.c.l.b16 %v76
    %v172 = vunpack.c.l.b16 %v77
    %v173 = vpack.c.b16 %v170, %v169
    %v174 = vpack.c.b16 %v172, %v171
    %vm177 = vcmask 261120
    %v179 = vsel %vm177, %v149, 0
    %v182 = vsel %vm177, %v150, 0
    %v185 = vsel %vm177, %v151, 0
    %v188 = vsel %vm177, %v152, 0
    %v191 = vsel %vm177, %v153, 0
    %v194 = vsel %vm177, %v154, 0
    %v197 = vsel %vm177, %v155, 0
    %v200 = vsel %vm177, %v156, 0
    %v203 = vsel %vm177, %v157, 0
    %v206 = vsel %vm177, %v158, 0
    %v209 = vsel %vm177, %v159, 0
    %v212 = vsel %vm177, %v160, 0
    %v215 = vsel %vm177, %v161, 0
    %v218 = vsel %vm177, %v162, 0
    %v221 = vsel %vm177, %v163, 0
    %v224 = vsel %vm177, %v164, 0
    %226 = vmatprep.subr.bf16.mxu0 0
    %227 = vmatpush1.bf16.msra.mxu0 %v173
    %228 = vmatprep.subr.bf16.mxu0 0
    %229 = vmatpush1.bf16.msra.mxu0 %v174
    %230 = vmatprep.subr.bf16.mxu0 0
    %231 = vmatpush1.bf16.msra.mxu0 0
    %232 = vmatprep.subr.bf16.mxu0 0
    %233 = vmatpush1.bf16.msra.mxu0 0
    %234 = vmatprep.subr.bf16.mxu0 0
    %235 = vmatpush1.bf16.msra.mxu0 0
    %236 = vmatprep.subr.bf16.mxu0 0
    %237 = vmatpush1.bf16.msra.mxu0 0
    %238 = vmatprep.subr.bf16.mxu0 0
    %239 = vmatpush1.bf16.msra.mxu0 0
    %240 = vmatprep.subr.bf16.mxu0 0
    %241 = vmatpush1.bf16.msra.mxu0 0
    %242 = vmatprep.subr.bf16.mxu0 0
    %243 = vmatpush1.bf16.msra.mxu0 0
    %244 = vmatprep.subr.bf16.mxu0 0
    %245 = vmatpush1.bf16.msra.mxu0 0
    %246 = vmatprep.subr.bf16.mxu0 0
    %247 = vmatpush1.bf16.msra.mxu0 0
    %248 = vmatprep.subr.bf16.mxu0 0
    %249 = vmatpush1.bf16.msra.mxu0 0
    %250 = vmatprep.subr.bf16.mxu0 0
    %251 = vmatpush1.bf16.msra.mxu0 0
    %252 = vmatprep.subr.bf16.mxu0 0
    %253 = vmatpush1.bf16.msra.mxu0 0
    %254 = vmatprep.subr.bf16.mxu0 0
    %255 = vmatpush1.bf16.msra.mxu0 0
    %256 = vmatprep.subr.bf16.mxu0 0
    %257 = vmatpush1.bf16.msra.mxu0 0
    %258 = vmatprep.mubr.bf16.mxu0 0
    %259 = vmatmul.mubr.bf16.gmra.mrb[0].mxu0 %v179
    %v260 = vpop.f32.mrb[0].mxu0
    %v261 = vadd.f32 %v83, %v260
    %v262 = vpop.f32.mrb[0].mxu0
    %v263 = vpop.f32.mrb[0].mxu0
    %v264 = vadd.f32 %v83, %v263
    %v265 = vpop.f32.mrb[0].mxu0
    %266 = vmatprep.mubr.bf16.mxu0 0
    %267 = vmatmul.mubr.bf16.gmra.mrb[0].mxu0 %v182
    %v268 = vpop.f32.mrb[0].mxu0
    %v269 = vadd.f32 %v83, %v268
    %v270 = vpop.f32.mrb[0].mxu0
    %v271 = vpop.f32.mrb[0].mxu0
    %v272 = vadd.f32 %v83, %v271
    %v273 = vpop.f32.mrb[0].mxu0
    %274 = vmatprep.mubr.bf16.mxu0 0
    %275 = vmatmul.mubr.bf16.gmra.mrb[0].mxu0 %v185
    %v276 = vpop.f32.mrb[0].mxu0
    %v277 = vadd.f32 %v83, %v276
    %v278 = vpop.f32.mrb[0].mxu0
    %v279 = vpop.f32.mrb[0].mxu0
    %v280 = vadd.f32 %v83, %v279
    %v281 = vpop.f32.mrb[0].mxu0
    %282 = vmatprep.mubr.bf16.mxu0 0
    %283 = vmatmul.mubr.bf16.gmra.mrb[0].mxu0 %v188
    %v284 = vpop.f32.mrb[0].mxu0
    %v285 = vadd.f32 %v83, %v284
    %v286 = vpop.f32.mrb[0].mxu0
    %v287 = vpop.f32.mrb[0].mxu0
    %v288 = vadd.f32 %v83, %v287
    %v289 = vpop.f32.mrb[0].mxu0
    %290 = vmatprep.mubr.bf16.mxu0 0
    %291 = vmatmul.mubr.bf16.gmra.mrb[0].mxu0 %v191
    %v292 = vpop.f32.mrb[0].mxu0
    %v293 = vadd.f32 %v83, %v292
    %v294 = vpop.f32.mrb[0].mxu0
    %v295 = vpop.f32.mrb[0].mxu0
    %v296 = vadd.f32 %v83, %v295
    %v297 = vpop.f32.mrb[0].mxu0
    %298 = vmatprep.mubr.bf16.mxu0 0
    %299 = vmatmul.mubr.bf16.gmra.mrb[0].mxu0 %v194
    %v300 = vpop.f32.mrb[0].mxu0
    %v301 = vadd.f32 %v83, %v300
    %v302 = vpop.f32.mrb[0].mxu0
    %v303 = vpop.f32.mrb[0].mxu0
    %v304 = vadd.f32 %v83, %v303
    %v305 = vpop.f32.mrb[0].mxu0
    %306 = vmatprep.mubr.bf16.mxu0 0
    %307 = vmatmul.mubr.bf16.gmra.mrb[0].mxu0 %v197
    %v308 = vpop.f32.mrb[0].mxu0
    %v309 = vadd.f32 %v83, %v308
    %v310 = vpop.f32.mrb[0].mxu0
    %v311 = vpop.f32.mrb[0].mxu0
    %v312 = vadd.f32 %v83, %v311
    %v313 = vpop.f32.mrb[0].mxu0
    %314 = vmatprep.mubr.bf16.mxu0 0
    %315 = vmatmul.mubr.bf16.gmra.mrb[0].mxu0 %v200
    %v316 = vpop.f32.mrb[0].mxu0
    %v317 = vadd.f32 %v83, %v316
    %v318 = vpop.f32.mrb[0].mxu0
    %v319 = vpop.f32.mrb[0].mxu0
    %v320 = vadd.f32 %v83, %v319
    %v321 = vpop.f32.mrb[0].mxu0
    %322 = vmatprep.mubr.bf16.mxu0 0
    %323 = vmatmul.mubr.bf16.gmra.mrb[0].mxu0 %v203
    %v324 = vpop.f32.mrb[0].mxu0
    %v325 = vadd.f32 %v83, %v324
    %v326 = vpop.f32.mrb[0].mxu0
    %v327 = vpop.f32.mrb[0].mxu0
    %v328 = vadd.f32 %v83, %v327
    %v329 = vpop.f32.mrb[0].mxu0
    %330 = vmatprep.mubr.bf16.mxu0 0
    %331 = vmatmul.mubr.bf16.gmra.mrb[0].mxu0 %v206
    %v332 = vpop.f32.mrb[0].mxu0
    %v333 = vadd.f32 %v83, %v332
    %v334 = vpop.f32.mrb[0].mxu0
    %v335 = vpop.f32.mrb[0].mxu0
    %v336 = vadd.f32 %v83, %v335
    %v337 = vpop.f32.mrb[0].mxu0
    %338 = vmatprep.mubr.bf16.mxu0 0
    %339 = vmatmul.mubr.bf16.gmra.mrb[0].mxu0 %v209
    %v340 = vpop.f32.mrb[0].mxu0
    %v341 = vadd.f32 %v83, %v340
    %v342 = vpop.f32.mrb[0].mxu0
    %v343 = vpop.f32.mrb[0].mxu0
    %v344 = vadd.f32 %v83, %v343
    %v345 = vpop.f32.mrb[0].mxu0
    %346 = vmatprep.mubr.bf16.mxu0 0
    %347 = vmatmul.mubr.bf16.gmra.mrb[0].mxu0 %v212
    %v348 = vpop.f32.mrb[0].mxu0
    %v349 = vadd.f32 %v83, %v348
    %v350 = vpop.f32.mrb[0].mxu0
    %v351 = vpop.f32.mrb[0].mxu0
    %v352 = vadd.f32 %v83, %v351
    %v353 = vpop.f32.mrb[0].mxu0
    %354 = vmatprep.mubr.bf16.mxu0 0
    %355 = vmatmul.mubr.bf16.gmra.mrb[0].mxu0 %v215
    %v356 = vpop.f32.mrb[0].mxu0
    %v357 = vadd.f32 %v83, %v356
    %v358 = vpop.f32.mrb[0].mxu0
    %v359 = vpop.f32.mrb[0].mxu0
    %v360 = vadd.f32 %v83, %v359
    %v361 = vpop.f32.mrb[0].mxu0
    %362 = vmatprep.mubr.bf16.mxu0 0
    %363 = vmatmul.mubr.bf16.gmra.mrb[0].mxu0 %v218
    %v364 = vpop.f32.mrb[0].mxu0
    %v365 = vadd.f32 %v83, %v364
    %v366 = vpop.f32.mrb[0].mxu0
    %v367 = vpop.f32.mrb[0].mxu0
    %v368 = vadd.f32 %v83, %v367
    %v369 = vpop.f32.mrb[0].mxu0
    %370 = vmatprep.mubr.bf16.mxu0 0
    %371 = vmatmul.mubr.bf16.gmra.mrb[0].mxu0 %v221
    %v372 = vpop.f32.mrb[0].mxu0
    %v373 = vadd.f32 %v83, %v372
    %v374 = vpop.f32.mrb[0].mxu0
    %v375 = vpop.f32.mrb[0].mxu0
    %v376 = vadd.f32 %v83, %v375
    %v377 = vpop.f32.mrb[0].mxu0
    %378 = vmatprep.mubr.bf16.mxu0 0
    %379 = vmatmul.mubr.bf16.gmra.mrb[0].mxu0 %v224
    %v380 = vpop.f32.mrb[0].mxu0
    %v381 = vadd.f32 %v83, %v380
    %v382 = vpop.f32.mrb[0].mxu0
    %v383 = vpop.f32.mrb[0].mxu0
    %v384 = vadd.f32 %v83, %v383
    %v385 = vpop.f32.mrb[0].mxu0
    %386 = vdwg.mxu0
    %v387 = vmax.f32 %v261, 0.0
    %v388 = vmax.f32 %v264, 0.0
    %v389 = vmax.f32 %v269, 0.0
    %v390 = vmax.f32 %v272, 0.0
    %v391 = vmax.f32 %v277, 0.0
    %v392 = vmax.f32 %v280, 0.0
    %v393 = vmax.f32 %v285, 0.0
    %v394 = vmax.f32 %v288, 0.0
    %v395 = vmax.f32 %v293, 0.0
    %v396 = vmax.f32 %v296, 0.0
    %v397 = vmax.f32 %v301, 0.0
    %v398 = vmax.f32 %v304, 0.0
    %v399 = vmax.f32 %v309, 0.0
    %v400 = vmax.f32 %v312, 0.0
    %v401 = vmax.f32 %v317, 0.0
    %v402 = vmax.f32 %v320, 0.0
    %v403 = vmax.f32 %v325, 0.0
    %v404 = vmax.f32 %v328, 0.0
    %v405 = vmax.f32 %v333, 0.0
    %v406 = vmax.f32 %v336, 0.0
    %v407 = vmax.f32 %v341, 0.0
    %v408 = vmax.f32 %v344, 0.0
    %v409 = vmax.f32 %v349, 0.0
    %v410 = vmax.f32 %v352, 0.0
    %v411 = vmax.f32 %v357, 0.0
    %v412 = vmax.f32 %v360, 0.0
    %v413 = vmax.f32 %v365, 0.0
    %v414 = vmax.f32 %v368, 0.0
    %v415 = vmax.f32 %v373, 0.0
    %v416 = vmax.f32 %v376, 0.0
    %v417 = vmax.f32 %v381, 0.0
    %v418 = vmax.f32 %v384, 0.0
    %v419 = vpack.c.bf16 %v388, %v387
    %v420 = vpack.c.bf16 %v390, %v389
    %v421 = vpack.c.bf16 %v392, %v391
    %v422 = vpack.c.bf16 %v394, %v393
    %v423 = vpack.c.bf16 %v396, %v395
    %v424 = vpack.c.bf16 %v398, %v397
    %v425 = vpack.c.bf16 %v400, %v399
    %v426 = vpack.c.bf16 %v402, %v401
    %v427 = vpack.c.bf16 %v404, %v403
    %v428 = vpack.c.bf16 %v406, %v405
    %v429 = vpack.c.bf16 %v408, %v407
    %v430 = vpack.c.bf16 %v410, %v409
    %v431 = vpack.c.bf16 %v412, %v411
    %v432 = vpack.c.bf16 %v414, %v413
    %v433 = vpack.c.bf16 %v416, %v415
    %v434 = vpack.c.bf16 %v418, %v417
    %v435 = vld [vmem:[#allocation2] sm:$0xf]
    %v436 = vld [vmem:[#allocation2 + $0x4] sm:$0xf]
    %v437 = vld [vmem:[#allocation2 + $0x8] sm:$0xf]
    %v438 = vld [vmem:[#allocation2 + $0xc] sm:$0xf]
    %v439 = vld [vmem:[#allocation2 + $0x10] sm:$0xf]
    %v440 = vld [vmem:[#allocation2 + $0x14] sm:$0xf]
    %v441 = vld [vmem:[#allocation2 + $0x18] sm:$0xf]
    %v442 = vld [vmem:[#allocation2 + $0x1c] sm:$0xf]
    %v443 = vld [vmem:[#allocation2 + $0x20] sm:$0xf]
    %v444 = vld [vmem:[#allocation2 + $0x24] sm:$0xf]
    %v445 = vld [vmem:[#allocation2 + $0x28] sm:$0xf]
    %v446 = vld [vmem:[#allocation2 + $0x2c] sm:$0xf]
    %v447 = vld [vmem:[#allocation2 + $0x30] sm:$0xf]
    %v448 = vld [vmem:[#allocation2 + $0x34] sm:$0xf]
    %v449 = vld [vmem:[#allocation2 + $0x38] sm:$0xf]
    %v450 = vld [vmem:[#allocation2 + $0x3c] sm:$0xf]
    %v451 = vld [vmem:[%s4] sm:$0x1]
    %v453 = vlaneseq
    %v454 = vshrl.u32 %v453, 7
    %v455 = vsub.s32 0, %v454
    %v456 = vrot.slane %v451, %v455
    %v474 = vunpack.c.l.b16 %v435
    %v475 = vunpack.c.l.b16 %v436
    %v476 = vunpack.c.l.b16 %v437
    %v477 = vunpack.c.l.b16 %v438
    %v478 = vunpack.c.l.b16 %v439
    %v479 = vunpack.c.l.b16 %v440
    %v480 = vunpack.c.l.b16 %v441
    %v481 = vunpack.c.l.b16 %v442
    %v482 = vunpack.c.l.b16 %v443
    %v483 = vunpack.c.l.b16 %v444
    %v484 = vunpack.c.l.b16 %v445
    %v485 = vunpack.c.l.b16 %v446
    %v486 = vunpack.c.l.b16 %v447
    %v487 = vunpack.c.l.b16 %v448
    %v488 = vunpack.c.l.b16 %v449
    %v489 = vunpack.c.l.b16 %v450
    %v490 = vpack.c.b16 %v475, %v474
    %v491 = vpack.c.b16 %v477, %v476
    %v492 = vpack.c.b16 %v479, %v478
    %v493 = vpack.c.b16 %v481, %v480
    %v494 = vpack.c.b16 %v483, %v482
    %v495 = vpack.c.b16 %v485, %v484
    %v496 = vpack.c.b16 %v487, %v486
    %v497 = vpack.c.b16 %v489, %v488
    %506 = vmatprep.subr.bf16.mxu0 0
    %507 = vmatpush1.bf16.msra.mxu0 %v490
    %508 = vmatprep.subr.bf16.mxu0 0
    %509 = vmatpush1.bf16.msra.mxu0 %v491
    %510 = vmatprep.subr.bf16.mxu0 0
    %511 = vmatpush1.bf16.msra.mxu0 %v492
    %512 = vmatprep.subr.bf16.mxu0 0
    %513 = vmatpush1.bf16.msra.mxu0 %v493
    %514 = vmatprep.subr.bf16.mxu0 0
    %515 = vmatpush1.bf16.msra.mxu0 %v494
    %516 = vmatprep.subr.bf16.mxu0 0
    %517 = vmatpush1.bf16.msra.mxu0 %v495
    %518 = vmatprep.subr.bf16.mxu0 0
    %519 = vmatpush1.bf16.msra.mxu0 %v496
    %520 = vmatprep.subr.bf16.mxu0 0
    %521 = vmatpush1.bf16.msra.mxu0 %v497
    %522 = vmatprep.subr.bf16.mxu0 0
    %523 = vmatpush1.bf16.msra.mxu0 0
    %524 = vmatprep.subr.bf16.mxu0 0
    %525 = vmatpush1.bf16.msra.mxu0 0
    %526 = vmatprep.subr.bf16.mxu0 0
    %527 = vmatpush1.bf16.msra.mxu0 0
    %528 = vmatprep.subr.bf16.mxu0 0
    %529 = vmatpush1.bf16.msra.mxu0 0
    %530 = vmatprep.subr.bf16.mxu0 0
    %531 = vmatpush1.bf16.msra.mxu0 0
    %532 = vmatprep.subr.bf16.mxu0 0
    %533 = vmatpush1.bf16.msra.mxu0 0
    %534 = vmatprep.subr.bf16.mxu0 0
    %535 = vmatpush1.bf16.msra.mxu0 0
    %536 = vmatprep.subr.bf16.mxu0 0
    %537 = vmatpush1.bf16.msra.mxu0 0
    %538 = vmatprep.mubr.bf16.mxu0 0
    %539 = vmatmul.mubr.bf16.gmra.mrb[0].mxu0 %v419
    %v540 = vpop.f32.mrb[0].mxu0
    %v541 = vadd.f32 %v456, %v540
    %v542 = vpop.f32.mrb[0].mxu0
    %v543 = vpop.f32.mrb[0].mxu0
    %v544 = vadd.f32 %v456, %v543
    %v545 = vpop.f32.mrb[0].mxu0
    %546 = vmatprep.mubr.bf16.mxu0 0
    %547 = vmatmul.mubr.bf16.gmra.mrb[0].mxu0 %v420
    %v548 = vpop.f32.mrb[0].mxu0
    %v549 = vadd.f32 %v456, %v548
    %v550 = vpop.f32.mrb[0].mxu0
    %v551 = vpop.f32.mrb[0].mxu0
    %v552 = vadd.f32 %v456, %v551
    %v553 = vpop.f32.mrb[0].mxu0
    %554 = vmatprep.mubr.bf16.mxu0 0
    %555 = vmatmul.mubr.bf16.gmra.mrb[0].mxu0 %v421
    %v556 = vpop.f32.mrb[0].mxu0
    %v557 = vadd.f32 %v456, %v556
    %v558 = vpop.f32.mrb[0].mxu0
    %v559 = vpop.f32.mrb[0].mxu0
    %v560 = vadd.f32 %v456, %v559
    %v561 = vpop.f32.mrb[0].mxu0
    %562 = vmatprep.mubr.bf16.mxu0 0
    %563 = vmatmul.mubr.bf16.gmra.mrb[0].mxu0 %v422
    %v564 = vpop.f32.mrb[0].mxu0
    %v565 = vadd.f32 %v456, %v564
    %v566 = vpop.f32.mrb[0].mxu0
    %v567 = vpop.f32.mrb[0].mxu0
    %v568 = vadd.f32 %v456, %v567
    %v569 = vpop.f32.mrb[0].mxu0
    %570 = vmatprep.mubr.bf16.mxu0 0
    %571 = vmatmul.mubr.bf16.gmra.mrb[0].mxu0 %v423
    %v572 = vpop.f32.mrb[0].mxu0
    %v573 = vadd.f32 %v456, %v572
    %v574 = vpop.f32.mrb[0].mxu0
    %v575 = vpop.f32.mrb[0].mxu0
    %v576 = vadd.f32 %v456, %v575
    %v577 = vpop.f32.mrb[0].mxu0
    %578 = vmatprep.mubr.bf16.mxu0 0
    %579 = vmatmul.mubr.bf16.gmra.mrb[0].mxu0 %v424
    %v580 = vpop.f32.mrb[0].mxu0
    %v581 = vadd.f32 %v456, %v580
    %v582 = vpop.f32.mrb[0].mxu0
    %v583 = vpop.f32.mrb[0].mxu0
    %v584 = vadd.f32 %v456, %v583
    %v585 = vpop.f32.mrb[0].mxu0
    %586 = vmatprep.mubr.bf16.mxu0 0
    %587 = vmatmul.mubr.bf16.gmra.mrb[0].mxu0 %v425
    %v588 = vpop.f32.mrb[0].mxu0
    %v589 = vadd.f32 %v456, %v588
    %v590 = vpop.f32.mrb[0].mxu0
    %v591 = vpop.f32.mrb[0].mxu0
    %v592 = vadd.f32 %v456, %v591
    %v593 = vpop.f32.mrb[0].mxu0
    %594 = vmatprep.mubr.bf16.mxu0 0
    %595 = vmatmul.mubr.bf16.gmra.mrb[0].mxu0 %v426
    %v596 = vpop.f32.mrb[0].mxu0
    %v597 = vadd.f32 %v456, %v596
    %v598 = vpop.f32.mrb[0].mxu0
    %v599 = vpop.f32.mrb[0].mxu0
    %v600 = vadd.f32 %v456, %v599
    %v601 = vpop.f32.mrb[0].mxu0
    %602 = vmatprep.mubr.bf16.mxu0 0
    %603 = vmatmul.mubr.bf16.gmra.mrb[0].mxu0 %v427
    %v604 = vpop.f32.mrb[0].mxu0
    %v605 = vadd.f32 %v456, %v604
    %v606 = vpop.f32.mrb[0].mxu0
    %v607 = vpop.f32.mrb[0].mxu0
    %v608 = vadd.f32 %v456, %v607
    %v609 = vpop.f32.mrb[0].mxu0
    %610 = vmatprep.mubr.bf16.mxu0 0
    %611 = vmatmul.mubr.bf16.gmra.mrb[0].mxu0 %v428
    %v612 = vpop.f32.mrb[0].mxu0
    %v613 = vadd.f32 %v456, %v612
    %v614 = vpop.f32.mrb[0].mxu0
    %v615 = vpop.f32.mrb[0].mxu0
    %v616 = vadd.f32 %v456, %v615
    %v617 = vpop.f32.mrb[0].mxu0
    %618 = vmatprep.mubr.bf16.mxu0 0
    %619 = vmatmul.mubr.bf16.gmra.mrb[0].mxu0 %v429
    %v620 = vpop.f32.mrb[0].mxu0
    %v621 = vadd.f32 %v456, %v620
    %v622 = vpop.f32.mrb[0].mxu0
    %v623 = vpop.f32.mrb[0].mxu0
    %v624 = vadd.f32 %v456, %v623
    %v625 = vpop.f32.mrb[0].mxu0
    %626 = vmatprep.mubr.bf16.mxu0 0
    %627 = vmatmul.mubr.bf16.gmra.mrb[0].mxu0 %v430
    %v628 = vpop.f32.mrb[0].mxu0
    %v629 = vadd.f32 %v456, %v628
    %v630 = vpop.f32.mrb[0].mxu0
    %v631 = vpop.f32.mrb[0].mxu0
    %v632 = vadd.f32 %v456, %v631
    %v633 = vpop.f32.mrb[0].mxu0
    %634 = vmatprep.mubr.bf16.mxu0 0
    %635 = vmatmul.mubr.bf16.gmra.mrb[0].mxu0 %v431
    %v636 = vpop.f32.mrb[0].mxu0
    %v637 = vadd.f32 %v456, %v636
    %v638 = vpop.f32.mrb[0].mxu0
    %v639 = vpop.f32.mrb[0].mxu0
    %v640 = vadd.f32 %v456, %v639
    %v641 = vpop.f32.mrb[0].mxu0
    %642 = vmatprep.mubr.bf16.mxu0 0
    %643 = vmatmul.mubr.bf16.gmra.mrb[0].mxu0 %v432
    %v644 = vpop.f32.mrb[0].mxu0
    %v645 = vadd.f32 %v456, %v644
    %v646 = vpop.f32.mrb[0].mxu0
    %v647 = vpop.f32.mrb[0].mxu0
    %v648 = vadd.f32 %v456, %v647
    %v649 = vpop.f32.mrb[0].mxu0
    %650 = vmatprep.mubr.bf16.mxu0 0
    %651 = vmatmul.mubr.bf16.gmra.mrb[0].mxu0 %v433
    %v652 = vpop.f32.mrb[0].mxu0
    %v653 = vadd.f32 %v456, %v652
    %v654 = vpop.f32.mrb[0].mxu0
    %v655 = vpop.f32.mrb[0].mxu0
    %v656 = vadd.f32 %v456, %v655
    %v657 = vpop.f32.mrb[0].mxu0
    %658 = vmatprep.mubr.bf16.mxu0 0
    %659 = vmatmul.mubr.bf16.gmra.mrb[0].mxu0 %v434
    %v660 = vpop.f32.mrb[0].mxu0
    %v661 = vadd.f32 %v456, %v660
    %v662 = vpop.f32.mrb[0].mxu0
    %v663 = vpop.f32.mrb[0].mxu0
    %v664 = vadd.f32 %v456, %v663
    %v665 = vpop.f32.mrb[0].mxu0
    %666 = vdwg.mxu0
    %v667 = vmax.f32 %v541, 0.0
    %v668 = vmax.f32 %v544, 0.0
    %v669 = vmax.f32 %v549, 0.0
    %v670 = vmax.f32 %v552, 0.0
    %v671 = vmax.f32 %v557, 0.0
    %v672 = vmax.f32 %v560, 0.0
    %v673 = vmax.f32 %v565, 0.0
    %v674 = vmax.f32 %v568, 0.0
    %v675 = vmax.f32 %v573, 0.0
    %v676 = vmax.f32 %v576, 0.0
    %v677 = vmax.f32 %v581, 0.0
    %v678 = vmax.f32 %v584, 0.0
    %v679 = vmax.f32 %v589, 0.0
    %v680 = vmax.f32 %v592, 0.0
    %v681 = vmax.f32 %v597, 0.0
    %v682 = vmax.f32 %v600, 0.0
    %v683 = vmax.f32 %v605, 0.0
    %v684 = vmax.f32 %v608, 0.0
    %v685 = vmax.f32 %v613, 0.0
    %v686 = vmax.f32 %v616, 0.0
    %v687 = vmax.f32 %v621, 0.0
    %v688 = vmax.f32 %v624, 0.0
    %v689 = vmax.f32 %v629, 0.0
    %v690 = vmax.f32 %v632, 0.0
    %v691 = vmax.f32 %v637, 0.0
    %v692 = vmax.f32 %v640, 0.0
    %v693 = vmax.f32 %v645, 0.0
    %v694 = vmax.f32 %v648, 0.0
    %v695 = vmax.f32 %v653, 0.0
    %v696 = vmax.f32 %v656, 0.0
    %v697 = vmax.f32 %v661, 0.0
    %v698 = vmax.f32 %v664, 0.0
    %v699 = vpack.c.bf16 %v668, %v667
    %v700 = vpack.c.bf16 %v670, %v669
    %v701 = vpack.c.bf16 %v672, %v671
    %v702 = vpack.c.bf16 %v674, %v673
    %v703 = vpack.c.bf16 %v676, %v675
    %v704 = vpack.c.bf16 %v678, %v677
    %v705 = vpack.c.bf16 %v680, %v679
    %v706 = vpack.c.bf16 %v682, %v681
    %v707 = vpack.c.bf16 %v684, %v683
    %v708 = vpack.c.bf16 %v686, %v685
    %v709 = vpack.c.bf16 %v688, %v687
    %v710 = vpack.c.bf16 %v690, %v689
    %v711 = vpack.c.bf16 %v692, %v691
    %v712 = vpack.c.bf16 %v694, %v693
    %v713 = vpack.c.bf16 %v696, %v695
    %v714 = vpack.c.bf16 %v698, %v697
    %v715 = vld [vmem:[%s5] sm:$0xff]
    %v716 = vld [vmem:[%s5 + $0x8] sm:$0xff]
    %v717 = vld [vmem:[%s5 + $0x10] sm:$0xff]
    %v718 = vld [vmem:[%s5 + $0x18] sm:$0xff]
    %v719 = vld [vmem:[%s5 + $0x20] sm:$0xff]
    %v720 = vld [vmem:[%s5 + $0x28] sm:$0xff]
    %v721 = vld [vmem:[%s5 + $0x30] sm:$0xff]
    %v722 = vld [vmem:[%s5 + $0x38] sm:$0xff]
    %v723 = vld [vmem:[%s5 + $0x40] sm:$0xff]
    %v724 = vld [vmem:[%s5 + $0x48] sm:$0xff]
    %v725 = vld [vmem:[%s5 + $0x50] sm:$0xff]
    %v726 = vld [vmem:[%s5 + $0x58] sm:$0xff]
    %v727 = vld [vmem:[%s5 + $0x60] sm:$0xff]
    %v728 = vld [vmem:[%s5 + $0x68] sm:$0xff]
    %v729 = vld [vmem:[%s5 + $0x70] sm:$0xff]
    %v730 = vld [vmem:[%s5 + $0x78] sm:$0xff]
    %v731 = vld [vmem:[%s6] sm:$0x3]
    %v733 = vlaneseq
    %v734 = vshrl.u32 %v733, 7
    %v735 = vsub.s32 0, %v734
    %v736 = vrot.slane %v731, %v735
    %v737 = vlaneseq
    %v738 = vshrl.u32 %v737, 7
    %v739 = vsub.s32 1, %v738
    %v740 = vrot.slane %v731, %v739
    %v759 = vunpack.c.l.b16 %v715
    %v760 = vunpack.c.h.b16 %v715
    %v761 = vunpack.c.l.b16 %v716
    %v762 = vunpack.c.h.b16 %v716
    %v763 = vunpack.c.l.b16 %v717
    %v764 = vunpack.c.h.b16 %v717
    %v765 = vunpack.c.l.b16 %v718
    %v766 = vunpack.c.h.b16 %v718
    %v767 = vunpack.c.l.b16 %v719
    %v768 = vunpack.c.h.b16 %v719
    %v769 = vunpack.c.l.b16 %v720
    %v770 = vunpack.c.h.b16 %v720
    %v771 = vunpack.c.l.b16 %v721
    %v772 = vunpack.c.h.b16 %v721
    %v773 = vunpack.c.l.b16 %v722
    %v774 = vunpack.c.h.b16 %v722
    %v775 = vunpack.c.l.b16 %v723
    %v776 = vunpack.c.h.b16 %v723
    %v777 = vunpack.c.l.b16 %v724
    %v778 = vunpack.c.h.b16 %v724
    %v779 = vunpack.c.l.b16 %v725
    %v780 = vunpack.c.h.b16 %v725
    %v781 = vunpack.c.l.b16 %v726
    %v782 = vunpack.c.h.b16 %v726
    %v783 = vunpack.c.l.b16 %v727
    %v784 = vunpack.c.h.b16 %v727
    %v785 = vunpack.c.l.b16 %v728
    %v786 = vunpack.c.h.b16 %v728
    %v787 = vunpack.c.l.b16 %v729
    %v788 = vunpack.c.h.b16 %v729
    %v789 = vunpack.c.l.b16 %v730
    %v790 = vunpack.c.h.b16 %v730
    %v791 = vpack.c.b16 %v761, %v759
    %v792 = vpack.c.b16 %v762, %v760
    %v793 = vpack.c.b16 %v765, %v763
    %v794 = vpack.c.b16 %v766, %v764
    %v795 = vpack.c.b16 %v769, %v767
    %v796 = vpack.c.b16 %v770, %v768
    %v797 = vpack.c.b16 %v773, %v771
    %v798 = vpack.c.b16 %v774, %v772
    %v799 = vpack.c.b16 %v777, %v775
    %v800 = vpack.c.b16 %v778, %v776
    %v801 = vpack.c.b16 %v781, %v779
    %v802 = vpack.c.b16 %v782, %v780
    %v803 = vpack.c.b16 %v785, %v783
    %v804 = vpack.c.b16 %v786, %v784
    %v805 = vpack.c.b16 %v789, %v787
    %v806 = vpack.c.b16 %v790, %v788
    %823 = vmatprep.subr.bf16.mxu0 %v792
    %824 = vmatpush1.bf16.msra.mxu0 %v791
    %825 = vmatprep.subr.bf16.mxu0 %v794
    %826 = vmatpush1.bf16.msra.mxu0 %v793
    %827 = vmatprep.subr.bf16.mxu0 %v796
    %828 = vmatpush1.bf16.msra.mxu0 %v795
    %829 = vmatprep.subr.bf16.mxu0 %v798
    %830 = vmatpush1.bf16.msra.mxu0 %v797
    %831 = vmatprep.subr.bf16.mxu0 %v800
    %832 = vmatpush1.bf16.msra.mxu0 %v799
    %833 = vmatprep.subr.bf16.mxu0 %v802
    %834 = vmatpush1.bf16.msra.mxu0 %v801
    %835 = vmatprep.subr.bf16.mxu0 %v804
    %836 = vmatpush1.bf16.msra.mxu0 %v803
    %837 = vmatprep.subr.bf16.mxu0 %v806
    %838 = vmatpush1.bf16.msra.mxu0 %v805
    %839 = vmatprep.subr.bf16.mxu0 0
    %840 = vmatpush1.bf16.msra.mxu0 0
    %841 = vmatprep.subr.bf16.mxu0 0
    %842 = vmatpush1.bf16.msra.mxu0 0
    %843 = vmatprep.subr.bf16.mxu0 0
    %844 = vmatpush1.bf16.msra.mxu0 0
    %845 = vmatprep.subr.bf16.mxu0 0
    %846 = vmatpush1.bf16.msra.mxu0 0
    %847 = vmatprep.subr.bf16.mxu0 0
    %848 = vmatpush1.bf16.msra.mxu0 0
    %849 = vmatprep.subr.bf16.mxu0 0
    %850 = vmatpush1.bf16.msra.mxu0 0
    %851 = vmatprep.subr.bf16.mxu0 0
    %852 = vmatpush1.bf16.msra.mxu0 0
    %853 = vmatprep.subr.bf16.mxu0 0
    %854 = vmatpush1.bf16.msra.mxu0 0
    %855 = vmatprep.mubr.bf16.mxu0 0
    %856 = vmatmul.mubr.bf16.gmra.mrb[0].mxu0 %v699
    %v857 = vpop.f32.mrb[0].mxu0
    %v858 = vadd.f32 %v736, %v857
    %v859 = vpop.f32.mrb[0].mxu0
    %v860 = vadd.f32 %v740, %v859
    %v861 = vpop.f32.mrb[0].mxu0
    %v862 = vadd.f32 %v736, %v861
    %v863 = vpop.f32.mrb[0].mxu0
    %v864 = vadd.f32 %v740, %v863
    %865 = vmatprep.mubr.bf16.mxu0 0
    %866 = vmatmul.mubr.bf16.gmra.mrb[0].mxu0 %v700
    %v867 = vpop.f32.mrb[0].mxu0
    %v868 = vadd.f32 %v736, %v867
    %v869 = vpop.f32.mrb[0].mxu0
    %v870 = vadd.f32 %v740, %v869
    %v871 = vpop.f32.mrb[0].mxu0
    %v872 = vadd.f32 %v736, %v871
    %v873 = vpop.f32.mrb[0].mxu0
    %v874 = vadd.f32 %v740, %v873
    %875 = vmatprep.mubr.bf16.mxu0 0
    %876 = vmatmul.mubr.bf16.gmra.mrb[0].mxu0 %v701
    %v877 = vpop.f32.mrb[0].mxu0
    %v878 = vadd.f32 %v736, %v877
    %v879 = vpop.f32.mrb[0].mxu0
    %v880 = vadd.f32 %v740, %v879
    %v881 = vpop.f32.mrb[0].mxu0
    %v882 = vadd.f32 %v736, %v881
    %v883 = vpop.f32.mrb[0].mxu0
    %v884 = vadd.f32 %v740, %v883
    %885 = vmatprep.mubr.bf16.mxu0 0
    %886 = vmatmul.mubr.bf16.gmra.mrb[0].mxu0 %v702
    %v887 = vpop.f32.mrb[0].mxu0
    %v888 = vadd.f32 %v736, %v887
    %v889 = vpop.f32.mrb[0].mxu0
    %v890 = vadd.f32 %v740, %v889
    %v891 = vpop.f32.mrb[0].mxu0
    %v892 = vadd.f32 %v736, %v891
    %v893 = vpop.f32.mrb[0].mxu0
    %v894 = vadd.f32 %v740, %v893
    %895 = vmatprep.mubr.bf16.mxu0 0
    %896 = vmatmul.mubr.bf16.gmra.mrb[0].mxu0 %v703
    %v897 = vpop.f32.mrb[0].mxu0
    %v898 = vadd.f32 %v736, %v897
    %v899 = vpop.f32.mrb[0].mxu0
    %v900 = vadd.f32 %v740, %v899
    %v901 = vpop.f32.mrb[0].mxu0
    %v902 = vadd.f32 %v736, %v901
    %v903 = vpop.f32.mrb[0].mxu0
    %v904 = vadd.f32 %v740, %v903
    %905 = vmatprep.mubr.bf16.mxu0 0
    %906 = vmatmul.mubr.bf16.gmra.mrb[0].mxu0 %v704
    %v907 = vpop.f32.mrb[0].mxu0
    %v908 = vadd.f32 %v736, %v907
    %v909 = vpop.f32.mrb[0].mxu0
    %v910 = vadd.f32 %v740, %v909
    %v911 = vpop.f32.mrb[0].mxu0
    %v912 = vadd.f32 %v736, %v911
    %v913 = vpop.f32.mrb[0].mxu0
    %v914 = vadd.f32 %v740, %v913
    %915 = vmatprep.mubr.bf16.mxu0 0
    %916 = vmatmul.mubr.bf16.gmra.mrb[0].mxu0 %v705
    %v917 = vpop.f32.mrb[0].mxu0
    %v918 = vadd.f32 %v736, %v917
    %v919 = vpop.f32.mrb[0].mxu0
    %v920 = vadd.f32 %v740, %v919
    %v921 = vpop.f32.mrb[0].mxu0
    %v922 = vadd.f32 %v736, %v921
    %v923 = vpop.f32.mrb[0].mxu0
    %v924 = vadd.f32 %v740, %v923
    %925 = vmatprep.mubr.bf16.mxu0 0
    %926 = vmatmul.mubr.bf16.gmra.mrb[0].mxu0 %v706
    %v927 = vpop.f32.mrb[0].mxu0
    %v928 = vadd.f32 %v736, %v927
    %v929 = vpop.f32.mrb[0].mxu0
    %v930 = vadd.f32 %v740, %v929
    %v931 = vpop.f32.mrb[0].mxu0
    %v932 = vadd.f32 %v736, %v931
    %v933 = vpop.f32.mrb[0].mxu0
    %v934 = vadd.f32 %v740, %v933
    %935 = vmatprep.mubr.bf16.mxu0 0
    %936 = vmatmul.mubr.bf16.gmra.mrb[0].mxu0 %v707
    %v937 = vpop.f32.mrb[0].mxu0
    %v938 = vadd.f32 %v736, %v937
    %v939 = vpop.f32.mrb[0].mxu0
    %v940 = vadd.f32 %v740, %v939
    %v941 = vpop.f32.mrb[0].mxu0
    %v942 = vadd.f32 %v736, %v941
    %v943 = vpop.f32.mrb[0].mxu0
    %v944 = vadd.f32 %v740, %v943
    %945 = vmatprep.mubr.bf16.mxu0 0
    %946 = vmatmul.mubr.bf16.gmra.mrb[0].mxu0 %v708
    %v947 = vpop.f32.mrb[0].mxu0
    %v948 = vadd.f32 %v736, %v947
    %v949 = vpop.f32.mrb[0].mxu0
    %v950 = vadd.f32 %v740, %v949
    %v951 = vpop.f32.mrb[0].mxu0
    %v952 = vadd.f32 %v736, %v951
    %v953 = vpop.f32.mrb[0].mxu0
    %v954 = vadd.f32 %v740, %v953
    %955 = vmatprep.mubr.bf16.mxu0 0
    %956 = vmatmul.mubr.bf16.gmra.mrb[0].mxu0 %v709
    %v957 = vpop.f32.mrb[0].mxu0
    %v958 = vadd.f32 %v736, %v957
    %v959 = vpop.f32.mrb[0].mxu0
    %v960 = vadd.f32 %v740, %v959
    %v961 = vpop.f32.mrb[0].mxu0
    %v962 = vadd.f32 %v736, %v961
    %v963 = vpop.f32.mrb[0].mxu0
    %v964 = vadd.f32 %v740, %v963
    %965 = vmatprep.mubr.bf16.mxu0 0
    %966 = vmatmul.mubr.bf16.gmra.mrb[0].mxu0 %v710
    %v967 = vpop.f32.mrb[0].mxu0
    %v968 = vadd.f32 %v736, %v967
    %v969 = vpop.f32.mrb[0].mxu0
    %v970 = vadd.f32 %v740, %v969
    %v971 = vpop.f32.mrb[0].mxu0
    %v972 = vadd.f32 %v736, %v971
    %v973 = vpop.f32.mrb[0].mxu0
    %v974 = vadd.f32 %v740, %v973
    %975 = vmatprep.mubr.bf16.mxu0 0
    %976 = vmatmul.mubr.bf16.gmra.mrb[0].mxu0 %v711
    %v977 = vpop.f32.mrb[0].mxu0
    %v978 = vadd.f32 %v736, %v977
    %v979 = vpop.f32.mrb[0].mxu0
    %v980 = vadd.f32 %v740, %v979
    %v981 = vpop.f32.mrb[0].mxu0
    %v982 = vadd.f32 %v736, %v981
    %v983 = vpop.f32.mrb[0].mxu0
    %v984 = vadd.f32 %v740, %v983
    %985 = vmatprep.mubr.bf16.mxu0 0
    %986 = vmatmul.mubr.bf16.gmra.mrb[0].mxu0 %v712
    %v987 = vpop.f32.mrb[0].mxu0
    %v988 = vadd.f32 %v736, %v987
    %v989 = vpop.f32.mrb[0].mxu0
    %v990 = vadd.f32 %v740, %v989
    %v991 = vpop.f32.mrb[0].mxu0
    %v992 = vadd.f32 %v736, %v991
    %v993 = vpop.f32.mrb[0].mxu0
    %v994 = vadd.f32 %v740, %v993
    %995 = vmatprep.mubr.bf16.mxu0 0
    %996 = vmatmul.mubr.bf16.gmra.mrb[0].mxu0 %v713
    %v997 = vpop.f32.mrb[0].mxu0
    %v998 = vadd.f32 %v736, %v997
    %v999 = vpop.f32.mrb[0].mxu0
    %v1000 = vadd.f32 %v740, %v999
    %v1001 = vpop.f32.mrb[0].mxu0
    %v1002 = vadd.f32 %v736, %v1001
    %v1003 = vpop.f32.mrb[0].mxu0
    %v1004 = vadd.f32 %v740, %v1003
    %1005 = vmatprep.mubr.bf16.mxu0 0
    %1006 = vmatmul.mubr.bf16.gmra.mrb[0].mxu0 %v714
    %v1007 = vpop.f32.mrb[0].mxu0
    %v1008 = vadd.f32 %v736, %v1007
    %v1009 = vpop.f32.mrb[0].mxu0
    %v1010 = vadd.f32 %v740, %v1009
    %v1011 = vpop.f32.mrb[0].mxu0
    %v1012 = vadd.f32 %v736, %v1011
    %v1013 = vpop.f32.mrb[0].mxu0
    %v1014 = vadd.f32 %v740, %v1013
    %1015 = vdwg.mxu0
    %v1016 = vmax.f32 %v858, 0.0
    %v1017 = vmax.f32 %v860, 0.0
    %v1018 = vmax.f32 %v862, 0.0
    %v1019 = vmax.f32 %v864, 0.0
    %v1020 = vmax.f32 %v868, 0.0
    %v1021 = vmax.f32 %v870, 0.0
    %v1022 = vmax.f32 %v872, 0.0
    %v1023 = vmax.f32 %v874, 0.0
    %v1024 = vmax.f32 %v878, 0.0
    %v1025 = vmax.f32 %v880, 0.0
    %v1026 = vmax.f32 %v882, 0.0
    %v1027 = vmax.f32 %v884, 0.0
    %v1028 = vmax.f32 %v888, 0.0
    %v1029 = vmax.f32 %v890, 0.0
    %v1030 = vmax.f32 %v892, 0.0
    %v1031 = vmax.f32 %v894, 0.0
    %v1032 = vmax.f32 %v898, 0.0
    %v1033 = vmax.f32 %v900, 0.0
    %v1034 = vmax.f32 %v902, 0.0
    %v1035 = vmax.f32 %v904, 0.0
    %v1036 = vmax.f32 %v908, 0.0
    %v1037 = vmax.f32 %v910, 0.0
    %v1038 = vmax.f32 %v912, 0.0
    %v1039 = vmax.f32 %v914, 0.0
    %v1040 = vmax.f32 %v918, 0.0
    %v1041 = vmax.f32 %v920, 0.0
    %v1042 = vmax.f32 %v922, 0.0
    %v1043 = vmax.f32 %v924, 0.0
    %v1044 = vmax.f32 %v928, 0.0
    %v1045 = vmax.f32 %v930, 0.0
    %v1046 = vmax.f32 %v932, 0.0
    %v1047 = vmax.f32 %v934, 0.0
    %v1048 = vmax.f32 %v938, 0.0
    %v1049 = vmax.f32 %v940, 0.0
    %v1050 = vmax.f32 %v942, 0.0
    %v1051 = vmax.f32 %v944, 0.0
    %v1052 = vmax.f32 %v948, 0.0
    %v1053 = vmax.f32 %v950, 0.0
    %v1054 = vmax.f32 %v952, 0.0
    %v1055 = vmax.f32 %v954, 0.0
    %v1056 = vmax.f32 %v958, 0.0
    %v1057 = vmax.f32 %v960, 0.0
    %v1058 = vmax.f32 %v962, 0.0
    %v1059 = vmax.f32 %v964, 0.0
    %v1060 = vmax.f32 %v968, 0.0
    %v1061 = vmax.f32 %v970, 0.0
    %v1062 = vmax.f32 %v972, 0.0
    %v1063 = vmax.f32 %v974, 0.0
    %v1064 = vmax.f32 %v978, 0.0
    %v1065 = vmax.f32 %v980, 0.0
    %v1066 = vmax.f32 %v982, 0.0
    %v1067 = vmax.f32 %v984, 0.0
    %v1068 = vmax.f32 %v988, 0.0
    %v1069 = vmax.f32 %v990, 0.0
    %v1070 = vmax.f32 %v992, 0.0
    %v1071 = vmax.f32 %v994, 0.0
    %v1072 = vmax.f32 %v998, 0.0
    %v1073 = vmax.f32 %v1000, 0.0
    %v1074 = vmax.f32 %v1002, 0.0
    %v1075 = vmax.f32 %v1004, 0.0
    %v1076 = vmax.f32 %v1008, 0.0
    %v1077 = vmax.f32 %v1010, 0.0
    %v1078 = vmax.f32 %v1012, 0.0
    %v1079 = vmax.f32 %v1014, 0.0
    %1080 = vst [vmem:[#allocation5] sm:$0xff] %v1016
    %1081 = vst [vmem:[#allocation5 + $0x8] sm:$0xff] %v1017
    %1082 = vst [vmem:[#allocation5 + $0x10] sm:$0xff] %v1018
    %1083 = vst [vmem:[#allocation5 + $0x18] sm:$0xff] %v1019
    %1084 = vst [vmem:[#allocation5 + $0x20] sm:$0xff] %v1020
    %1085 = vst [vmem:[#allocation5 + $0x28] sm:$0xff] %v1021
    %1086 = vst [vmem:[#allocation5 + $0x30] sm:$0xff] %v1022
    %1087 = vst [vmem:[#allocation5 + $0x38] sm:$0xff] %v1023
    %1088 = vst [vmem:[#allocation5 + $0x40] sm:$0xff] %v1024
    %1089 = vst [vmem:[#allocation5 + $0x48] sm:$0xff] %v1025
    %1090 = vst [vmem:[#allocation5 + $0x50] sm:$0xff] %v1026
    %1091 = vst [vmem:[#allocation5 + $0x58] sm:$0xff] %v1027
    %1092 = vst [vmem:[#allocation5 + $0x60] sm:$0xff] %v1028
    %1093 = vst [vmem:[#allocation5 + $0x68] sm:$0xff] %v1029
    %1094 = vst [vmem:[#allocation5 + $0x70] sm:$0xff] %v1030
    %1095 = vst [vmem:[#allocation5 + $0x78] sm:$0xff] %v1031
    %1096 = vst [vmem:[#allocation5 + $0x80] sm:$0xff] %v1032
    %1097 = vst [vmem:[#allocation5 + $0x88] sm:$0xff] %v1033
    %1098 = vst [vmem:[#allocation5 + $0x90] sm:$0xff] %v1034
    %1099 = vst [vmem:[#allocation5 + $0x98] sm:$0xff] %v1035
    %1100 = vst [vmem:[#allocation5 + $0xa0] sm:$0xff] %v1036
    %1101 = vst [vmem:[#allocation5 + $0xa8] sm:$0xff] %v1037
    %1102 = vst [vmem:[#allocation5 + $0xb0] sm:$0xff] %v1038
    %1103 = vst [vmem:[#allocation5 + $0xb8] sm:$0xff] %v1039
    %1104 = vst [vmem:[#allocation5 + $0xc0] sm:$0xff] %v1040
    %1105 = vst [vmem:[#allocation5 + $0xc8] sm:$0xff] %v1041
    %1106 = vst [vmem:[#allocation5 + $0xd0] sm:$0xff] %v1042
    %1107 = vst [vmem:[#allocation5 + $0xd8] sm:$0xff] %v1043
    %1108 = vst [vmem:[#allocation5 + $0xe0] sm:$0xff] %v1044
    %1109 = vst [vmem:[#allocation5 + $0xe8] sm:$0xff] %v1045
    %1110 = vst [vmem:[#allocation5 + $0xf0] sm:$0xff] %v1046
    %1111 = vst [vmem:[#allocation5 + $0xf8] sm:$0xff] %v1047
    %1112 = vst [vmem:[#allocation5 + $0x100] sm:$0xff] %v1048
    %1113 = vst [vmem:[#allocation5 + $0x108] sm:$0xff] %v1049
    %1114 = vst [vmem:[#allocation5 + $0x110] sm:$0xff] %v1050
    %1115 = vst [vmem:[#allocation5 + $0x118] sm:$0xff] %v1051
    %1116 = vst [vmem:[#allocation5 + $0x120] sm:$0xff] %v1052
    %1117 = vst [vmem:[#allocation5 + $0x128] sm:$0xff] %v1053
    %1118 = vst [vmem:[#allocation5 + $0x130] sm:$0xff] %v1054
    %1119 = vst [vmem:[#allocation5 + $0x138] sm:$0xff] %v1055
    %1120 = vst [vmem:[#allocation5 + $0x140] sm:$0xff] %v1056
    %1121 = vst [vmem:[#allocation5 + $0x148] sm:$0xff] %v1057
    %1122 = vst [vmem:[#allocation5 + $0x150] sm:$0xff] %v1058
    %1123 = vst [vmem:[#allocation5 + $0x158] sm:$0xff] %v1059
    %1124 = vst [vmem:[#allocation5 + $0x160] sm:$0xff] %v1060
    %1125 = vst [vmem:[#allocation5 + $0x168] sm:$0xff] %v1061
    %1126 = vst [vmem:[#allocation5 + $0x170] sm:$0xff] %v1062
    %1127 = vst [vmem:[#allocation5 + $0x178] sm:$0xff] %v1063
    %1128 = vst [vmem:[#allocation5 + $0x180] sm:$0xff] %v1064
    %1129 = vst [vmem:[#allocation5 + $0x188] sm:$0xff] %v1065
    %1130 = vst [vmem:[#allocation5 + $0x190] sm:$0xff] %v1066
    %1131 = vst [vmem:[#allocation5 + $0x198] sm:$0xff] %v1067
    %1132 = vst [vmem:[#allocation5 + $0x1a0] sm:$0xff] %v1068
    %1133 = vst [vmem:[#allocation5 + $0x1a8] sm:$0xff] %v1069
    %1134 = vst [vmem:[#allocation5 + $0x1b0] sm:$0xff] %v1070
    %1135 = vst [vmem:[#allocation5 + $0x1b8] sm:$0xff] %v1071
    %1136 = vst [vmem:[#allocation5 + $0x1c0] sm:$0xff] %v1072
    %1137 = vst [vmem:[#allocation5 + $0x1c8] sm:$0xff] %v1073
    %1138 = vst [vmem:[#allocation5 + $0x1d0] sm:$0xff] %v1074
    %1139 = vst [vmem:[#allocation5 + $0x1d8] sm:$0xff] %v1075
    %1140 = vst [vmem:[#allocation5 + $0x1e0] sm:$0xff] %v1076
    %1141 = vst [vmem:[#allocation5 + $0x1e8] sm:$0xff] %v1077
    %1142 = vst [vmem:[#allocation5 + $0x1f0] sm:$0xff] %v1078
    %1143 = vst [vmem:[#allocation5 + $0x1f8] sm:$0xff] %v1079
    // Predicated region
    $region34: #{tpu_custom_call.1} parent=1 // pred_check
      _
    $region35: #{tpu_custom_call.1} parent=1 // pred_check_branch
      %1145 = sbr.rel (0) target = $region37
    $region36: #{tpu_custom_call.1} parent=1 // pred_region
      %s1147 = ssub.s32 8192, 8192
      %1148 = vsyncadd [#allocation4], %s1147
      %s1149 = sshll.u32 [#allocation5], 4
      %s1150 = int_to_ptr.vmem [resolvable:$true] %s1149
      %1155 = dma.vmem_to_hbm [thread:$0]  %s1150, 8192, %s7, [#allocation4], 256, 256, 16
    $region37: #{tpu_custom_call.1} parent=1 // pred_fallthru
      _
    // Predicated region
    $region38: #{tpu_custom_call.1} parent=1 // pred_check
      _
    $region39: #{tpu_custom_call.1} parent=1 // pred_check_branch
      %1157 = sbr.rel (0) target = $region41
    $region40: #{tpu_custom_call.1} parent=1 // pred_region
      %1158 = dma.done [#allocation4], 8192
    $region41: #{tpu_custom_call.1} parent=1 // pred_fallthru
      _
    %1159 = vsyncpa [#allocation3], 1
    %1160 = vsyncpa [#allocation4], 1

</llo_original>
